<compile_context>
chip_gen: v5e
topology: v5e:2x2
jax: 0.10.0
libtpu: 0.0.40
codegen_flags: <defaults>
</compile_context>

<pallas_src>
import functools
import numpy as np

import jax
import jax.numpy as jnp
from jax import lax
from jax.experimental import pallas as pl
from jax.experimental.pallas import tpu as pltpu


PAD = 4  # max dilation of the atrous branches


# ---------------------------------------------------------------------------
# Pallas kernel: one batch element per grid step, lane-packed (H, W*C) layout.
# ---------------------------------------------------------------------------
def mff_kernel(H, W, Cin, Cout,
               xp_ref,        # (1, Hp, Wp*Cin)        bf16
               wc_ref,        # (Wp*Cin, 4*W*Cout)     bf16  center taps, N-concat
               bc_ref,        # (1, 4*W*Cout)          f32   branch biases, concat
               woff_ref,      # (6, Wp*Cin, W*Cout)    bf16  ky=0/2 taps, br 2-4
               wfcat_ref,     # (4*W*Cout, W*Cout)     bf16  fusion weight, K-concat
               fused5_ref,    # (Wp*Cin, Cout)         f32   ssum @ (w5*s5) / (H*W)
               b5_ref,        # (1, Cout)              f32
               wf5t_ref,      # (Cout, W*Cout)         f32
               bf_ref,        # (1, W*Cout)            f32
               o_ref):        # (1, H, W*Cout)         f32
    f32 = jnp.float32
    bf16 = jnp.bfloat16
    WCo = W * Cout

    def rows(oy):
        # (H, Wp*Cin) row-shifted slab of the padded, lane-packed input.
        return xp_ref[0, pl.ds(oy, H), :]

    center = rows(PAD)                                              # bf16

    # --- all 4 branches' center-row taps in ONE matmul (N = 4*WCo) ----------
    center_out = jnp.dot(center, wc_ref[...],
                         preferred_element_type=f32) + bc_ref[...]  # (H, 4*WCo)

    # branch 1: 1x1 conv -> ReLU
    branch_outs = [jnp.maximum(center_out[:, :WCo], 0.0).astype(bf16)]

    # branches 2-4: dilated 3x3 convs -> add the ky=0/2 row-shifted taps.
    for bi, d in ((1, 2), (2, 3), (3, 4)):
        acc = center_out[:, bi * WCo:(bi + 1) * WCo]
        acc = acc + jnp.dot(rows(PAD - d), woff_ref[2 * (bi - 1)],
                            preferred_element_type=f32)
        acc = acc + jnp.dot(rows(PAD + d), woff_ref[2 * (bi - 1) + 1],
                            preferred_element_type=f32)
        branch_outs.append(jnp.maximum(acc, 0.0).astype(bf16))

    # --- fusion 1x1 conv over branches 1-4 in ONE matmul (K = 4*WCo) --------
    cat = jnp.concatenate(branch_outs, axis=-1)                     # (H, 4*WCo)
    fused = jnp.dot(cat, wfcat_ref[...],
                    preferred_element_type=f32)                     # (H, WCo)

    # --- branch 5: GAP -> 1x1 -> spatially constant fusion bias -------------
    # Padded lanes are zero and fused5 already folds the channel-sum selector,
    # the 1/(H*W) mean and the w5*s5 weight into one matrix.
    colsum = jnp.sum(center.astype(f32), axis=0, keepdims=True)     # (1, Wp*Cin)
    gap_pre = jnp.dot(colsum, fused5_ref[...],
                      preferred_element_type=f32)                   # (1, Cout)
    x5v = jnp.maximum(gap_pre + b5_ref[...], 0.0)
    bias5 = jnp.dot(x5v, wf5t_ref[...],
                    preferred_element_type=f32)                     # (1, WCo)

    # --- fusion BN bias + branch-5 bias combined once, then ReLU + store ----
    o_ref[0] = jnp.maximum(fused + (bias5 + bf_ref[...]), 0.0)


# ---------------------------------------------------------------------------
# Wrapper: lane-packs the input, builds the shifted block-diagonal weights
# (BN scale folded in, concatenated along N / K, cast to bf16) and calls the
# kernel over the batch.
# ---------------------------------------------------------------------------
def mff_forward(x_nhwc, p):
    N, H, W, Cin = x_nhwc.shape
    Cout = p["w1"].shape[-1]
    Hp, Wp = H + 2 * PAD, W + 2 * PAD
    WCi, WCo = Wp * Cin, W * Cout
    bf16 = jnp.bfloat16

    # lane-dense padded input: (N, Hp, Wp*Cin) in bf16
    xpad = jnp.pad(x_nhwc, ((0, 0), (PAD, PAD), (PAD, PAD), (0, 0)))
    xp = xpad.reshape(N, Hp, WCi).astype(bf16)

    def tile_cols(v):                 # (1, Cout) -> (1, W*Cout)
        return jnp.tile(v, (1, W))

    def placement(offsets):
        # E[k, x + offsets[k], x] = 1 : selects the padded input column feeding
        # output column x for tap k (numpy constant).
        E = np.zeros((len(offsets), Wp, W), np.float32)
        for k, off in enumerate(offsets):
            for x in range(W):
                E[k, x + off, x] = 1.0
        return jnp.asarray(E)

    s1p, s2p, s3p, s4p, sfp = (tile_cols(p[k])
                               for k in ("s1", "s2", "s3", "s4", "sf"))

    # 1x1 conv -> (Wp*Cin, W*Cout) block diagonal, BN scale folded in.
    w1_bd = (jnp.einsum('px,io->pixo', placement([PAD])[0], p["w1"])
             .reshape(WCi, WCo) * s1p)

    # dilated 3x3 convs: per ky one (Wp*Cin, W*Cout) matrix with all 3 kx taps.
    def dil_weight(w, sp, d):
        E = placement([PAD - d, PAD, PAD + d])           # kx = 0, 1, 2
        return [jnp.einsum('kpx,kio->pixo', E, w[ky]).reshape(WCi, WCo) * sp
                for ky in range(3)]

    wd2 = dil_weight(p["w2"], s2p, 2)
    wd3 = dil_weight(p["w3"], s3p, 3)
    wd4 = dil_weight(p["w4"], s4p, 4)

    # N-concat of all center-row (ky=1 / 1x1) weights -> one N=4*WCo matmul.
    wc = jnp.concatenate([w1_bd, wd2[1], wd3[1], wd4[1]], axis=1).astype(bf16)
    bc = jnp.concatenate([tile_cols(p[k]) for k in ("b1", "b2", "b3", "b4")],
                         axis=1)

    # off-center (ky = 0, 2) taps for branches 2-4.
    woff = jnp.stack([wd2[0], wd2[2], wd3[0], wd3[2], wd4[0], wd4[2]],
                     axis=0).astype(bf16)

    # fusion 1x1 conv: per-branch block diagonal, K-concatenated, scale folded.
    eyeW = jnp.asarray(np.eye(W, dtype=np.float32))
    wf_blocks = [jnp.einsum('px,io->pixo', eyeW,
                            p["wf"][i * Cout:(i + 1) * Cout]).reshape(WCo, WCo) * sfp
                 for i in range(4)]
    wfcat = jnp.concatenate(wf_blocks, axis=0).astype(bf16)          # (4*WCo, WCo)
    wf5t = jnp.tile(p["wf"][4 * Cout:5 * Cout], (1, W)) * sfp        # (Cout, WCo) f32

    # GAP chain folded into one (Wp*Cin, Cout) matrix (zeros on padded cols).
    ssum_np = np.zeros((WCi, Cin), np.float32)
    for x in range(W):
        ssum_np[(x + PAD) * Cin:(x + PAD + 1) * Cin, :] = np.eye(Cin)
    fused5 = (jnp.asarray(ssum_np) @ (p["w5"] * p["s5"])) / float(H * W)

    bfp = tile_cols(p["bf"])

    # Guard: block-diagonal weights scale as W^2*Cin*Cout -> re-tile over W
    # (see TODO) before this trips, or VMEM (64 MiB on v7x) will blow.
    packed_bytes = 2 * (wc.size + woff.size + wfcat.size)
    assert packed_bytes < 8 * 1024 * 1024, "re-tile over W before scaling shapes"

    operands = (xp, wc, bc, woff, wfcat, fused5, p["b5"], wf5t, bfp)

    def const_spec(a):
        nd = a.ndim
        return pl.BlockSpec(a.shape, lambda n, _nd=nd: (0,) * _nd)

    in_specs = [pl.BlockSpec((1, Hp, WCi), lambda n: (n, 0, 0))]
    in_specs += [const_spec(a) for a in operands[1:]]

    out_packed = pl.pallas_call(
        functools.partial(mff_kernel, H, W, Cin, Cout),
        out_shape=jax.ShapeDtypeStruct((N, H, WCo), jnp.float32),
        grid=(N,),
        in_specs=in_specs,
        out_specs=pl.BlockSpec((1, H, WCo), lambda n: (n, 0, 0)),
        compiler_params=pltpu.CompilerParams(
            dimension_semantics=("parallel",)),
    )(*operands)

    return out_packed.reshape(N, H, W, Cout)


# ---------------------------------------------------------------------------
# Deterministic parameter construction (synthetic weights, eval-mode BN folded
# into per-channel scale/bias).
# ---------------------------------------------------------------------------
def make_params(key, cin, cout):
    eps = 1e-5

    def bn_fold(k, c):
        k1, k2, k3, k4 = jax.random.split(k, 4)
        gamma = jax.random.uniform(k1, (c,), jnp.float32, 0.5, 1.5)
        beta = 0.1 * jax.random.normal(k2, (c,), jnp.float32)
        mean = 0.1 * jax.random.normal(k3, (c,), jnp.float32)
        var = jax.random.uniform(k4, (c,), jnp.float32, 0.5, 1.5)
        scale = gamma / jnp.sqrt(var + eps)
        bias = beta - mean * scale
        return scale.reshape(1, c), bias.reshape(1, c)

    keys = jax.random.split(key, 12)
    p = {}
    p["w1"] = 0.2 * jax.random.normal(keys[0], (cin, cout), jnp.float32)
    p["s1"], p["b1"] = bn_fold(keys[1], cout)
    p["w2"] = 0.2 * jax.random.normal(keys[2], (3, 3, cin, cout), jnp.float32)
    p["s2"], p["b2"] = bn_fold(keys[3], cout)
    p["w3"] = 0.2 * jax.random.normal(keys[4], (3, 3, cin, cout), jnp.float32)
    p["s3"], p["b3"] = bn_fold(keys[5], cout)
    p["w4"] = 0.2 * jax.random.normal(keys[6], (3, 3, cin, cout), jnp.float32)
    p["s4"], p["b4"] = bn_fold(keys[7], cout)
    p["w5"] = 0.2 * jax.random.normal(keys[8], (cin, cout), jnp.float32)
    p["s5"], p["b5"] = bn_fold(keys[9], cout)
    p["wf"] = 0.2 * jax.random.normal(keys[10], (5 * cout, cout), jnp.float32)
    p["sf"], p["bf"] = bn_fold(keys[11], cout)
    return p


# ---------------------------------------------------------------------------
# Pure-JAX reference with the SAME numeric semantics as the kernel: eval-mode
# BN folded into the conv weights, operands rounded to bf16 (exactly what the
# MXU sees), f32 accumulation.  This keeps the correctness check tight even
# with bf16 matmul operands.
# ---------------------------------------------------------------------------
def ref_forward(x, p):
    hi = lax.Precision.HIGHEST

    def rnd(a):  # bf16-round, keep f32 container
        return a.astype(jnp.bfloat16).astype(jnp.float32)

    def conv1x1(x, w):
        return jnp.einsum("nhwc,cd->nhwd", x, w, precision=hi)

    def conv3x3(x, w, d):
        return lax.conv_general_dilated(
            x, w, window_strides=(1, 1), padding=[(d, d), (d, d)],
            rhs_dilation=(d, d), dimension_numbers=("NHWC", "HWIO", "NHWC"),
            precision=hi)

    def bias_relu(y, b):
        return jnp.maximum(y + b.reshape(1, 1, 1, -1), 0.0)

    Cout = p["w1"].shape[-1]
    xr = rnd(x)

    x1 = bias_relu(conv1x1(xr, rnd(p["w1"] * p["s1"])), p["b1"])
    x2 = bias_relu(conv3x3(xr, rnd(p["w2"] * p["s2"]), 2), p["b2"])
    x3 = bias_relu(conv3x3(xr, rnd(p["w3"] * p["s3"]), 3), p["b3"])
    x4 = bias_relu(conv3x3(xr, rnd(p["w4"] * p["s4"]), 4), p["b4"])

    gap = jnp.mean(xr, axis=(1, 2), keepdims=True)
    x5 = jnp.maximum(conv1x1(gap, p["w5"] * p["s5"])
                     + p["b5"].reshape(1, 1, 1, -1), 0.0)
    x5 = jnp.broadcast_to(x5, x1.shape)

    cat4 = rnd(jnp.concatenate([x1, x2, x3, x4], axis=-1))
    wf4 = rnd(p["wf"][:4 * Cout] * p["sf"])
    wf5 = p["wf"][4 * Cout:] * p["sf"]                 # branch-5 path stays f32
    fused = conv1x1(cat4, wf4) + conv1x1(x5, wf5)
    return jnp.maximum(fused + p["bf"].reshape(1, 1, 1, -1), 0.0)


if __name__ == "__main__":
    # inplanes == outplanes is required by the module (fusionconv expects
    # inplanes*5 input channels while the concat has 5*outplanes).
    N, C, H, W = 2, 8, 16, 16
    key = jax.random.PRNGKey(0)
    kx, kp = jax.random.split(key)
    x_nhwc = jax.random.normal(kx, (N, H, W, C), jnp.float32)
    params = make_params(kp, C, C)

    out = jax.block_until_ready(mff_forward(x_nhwc, params))
    ref = jax.block_until_ready(ref_forward(x_nhwc, params))
    # bf16-operand / f32-accumulation semantics on both sides; only f32
    # summation-order noise and rare bf16 ulp flips remain.
    np.testing.assert_allclose(np.asarray(out), np.asarray(ref),
                               rtol=1e-2, atol=1e-2)
    print("KERNEL_OK")
</pallas_src>

<mosaic_0001>
module attributes {stable_mosaic.version = 11 : i64} {
  func.func @mff_kernel(%arg0: i32, %arg1: memref<1x24x192xbf16, #tpu.memory_space<vmem>>, %arg2: memref<192x512xbf16, #tpu.memory_space<vmem>>, %arg3: memref<1x512xf32, #tpu.memory_space<vmem>>, %arg4: memref<6x192x128xbf16, #tpu.memory_space<vmem>>, %arg5: memref<512x128xbf16, #tpu.memory_space<vmem>>, %arg6: memref<192x8xf32, #tpu.memory_space<vmem>>, %arg7: memref<1x8xf32, #tpu.memory_space<vmem>>, %arg8: memref<8x128xf32, #tpu.memory_space<vmem>>, %arg9: memref<1x128xf32, #tpu.memory_space<vmem>>, %arg10: memref<1x16x128xf32, #tpu.memory_space<vmem>>) attributes {dimension_semantics = [#tpu.dimension_semantics<parallel>], iteration_bounds = array<i64: 2>, scalar_prefetch = 0 : i64, scratch_operands = 0 : i64, tpu.core_type = #tpu.core_type<tc>, window_params = [{transform_indices = @transform_0, window_bounds = array<i64: 1, 24, 192>}, {pipeline_mode = #tpu.pipeline_mode<synchronous>, transform_indices = @transform_1, window_bounds = array<i64: 192, 512>}, {pipeline_mode = #tpu.pipeline_mode<synchronous>, transform_indices = @transform_2, window_bounds = array<i64: 1, 512>}, {pipeline_mode = #tpu.pipeline_mode<synchronous>, transform_indices = @transform_3, window_bounds = array<i64: 6, 192, 128>}, {pipeline_mode = #tpu.pipeline_mode<synchronous>, transform_indices = @transform_4, window_bounds = array<i64: 512, 128>}, {pipeline_mode = #tpu.pipeline_mode<synchronous>, transform_indices = @transform_5, window_bounds = array<i64: 192, 8>}, {pipeline_mode = #tpu.pipeline_mode<synchronous>, transform_indices = @transform_6, window_bounds = array<i64: 1, 8>}, {pipeline_mode = #tpu.pipeline_mode<synchronous>, transform_indices = @transform_7, window_bounds = array<i64: 8, 128>}, {pipeline_mode = #tpu.pipeline_mode<synchronous>, transform_indices = @transform_8, window_bounds = array<i64: 1, 128>}, {transform_indices = @transform_9, window_bounds = array<i64: 1, 16, 128>}]} {
    %c0 = arith.constant 0 : index
    %c4 = arith.constant 4 : index
    %c0_0 = arith.constant 0 : index
    %0 = vector.load %arg1[%c0, %c4, %c0_0] : memref<1x24x192xbf16, #tpu.memory_space<vmem>>, vector<1x16x192xbf16>
    %1 = vector.shape_cast %0 : vector<1x16x192xbf16> to vector<16x192xbf16>
    %c0_1 = arith.constant 0 : index
    %c0_2 = arith.constant 0 : index
    %2 = vector.load %arg2[%c0_1, %c0_2] : memref<192x512xbf16, #tpu.memory_space<vmem>>, vector<192x512xbf16>
    %cst = arith.constant dense<0.000000e+00> : vector<16x512xf32>
    %3 = tpu.matmul %1, %2, %cst {dimension_numbers = #tpu.dot_dimension_numbers<[1], [0], [0], [1], [0, 0, 1, 1], [], []>} : vector<16x192xbf16>, vector<192x512xbf16>, vector<16x512xf32> -> vector<16x512xf32>
    %c0_3 = arith.constant 0 : index
    %c0_4 = arith.constant 0 : index
    %4 = vector.load %arg3[%c0_3, %c0_4] : memref<1x512xf32, #tpu.memory_space<vmem>>, vector<1x512xf32>
    %5 = vector.broadcast %4 : vector<1x512xf32> to vector<16x512xf32>
    %6 = arith.addf %3, %5 : vector<16x512xf32>
    %7 = vector.extract_strided_slice %6 {offsets = [0, 0], sizes = [16, 128], strides = [1, 1]} : vector<16x512xf32> to vector<16x128xf32>
    %cst_5 = arith.constant 0.000000e+00 : f32
    %8 = vector.broadcast %cst_5 : f32 to vector<16x128xf32>
    %9 = arith.maximumf %7, %8 : vector<16x128xf32>
    %10 = arith.truncf %9 : vector<16x128xf32> to vector<16x128xbf16>
    %11 = vector.extract_strided_slice %6 {offsets = [0, 128], sizes = [16, 128], strides = [1, 1]} : vector<16x512xf32> to vector<16x128xf32>
    %c0_6 = arith.constant 0 : index
    %c2 = arith.constant 2 : index
    %c0_7 = arith.constant 0 : index
    %12 = vector.load %arg1[%c0_6, %c2, %c0_7] : memref<1x24x192xbf16, #tpu.memory_space<vmem>>, vector<1x16x192xbf16>
    %13 = vector.shape_cast %12 : vector<1x16x192xbf16> to vector<16x192xbf16>
    %c0_8 = arith.constant 0 : index
    %c0_9 = arith.constant 0 : index
    %c0_10 = arith.constant 0 : index
    %14 = vector.load %arg4[%c0_8, %c0_9, %c0_10] : memref<6x192x128xbf16, #tpu.memory_space<vmem>>, vector<1x192x128xbf16>
    %15 = vector.shape_cast %14 : vector<1x192x128xbf16> to vector<192x128xbf16>
    %cst_11 = arith.constant dense<0.000000e+00> : vector<16x128xf32>
    %16 = tpu.matmul %13, %15, %cst_11 {dimension_numbers = #tpu.dot_dimension_numbers<[1], [0], [0], [1], [0, 0, 1, 1], [], []>} : vector<16x192xbf16>, vector<192x128xbf16>, vector<16x128xf32> -> vector<16x128xf32>
    %17 = arith.addf %11, %16 : vector<16x128xf32>
    %c0_12 = arith.constant 0 : index
    %c6 = arith.constant 6 : index
    %c0_13 = arith.constant 0 : index
    %18 = vector.load %arg1[%c0_12, %c6, %c0_13] : memref<1x24x192xbf16, #tpu.memory_space<vmem>>, vector<1x16x192xbf16>
    %19 = vector.shape_cast %18 : vector<1x16x192xbf16> to vector<16x192xbf16>
    %c1 = arith.constant 1 : index
    %c0_14 = arith.constant 0 : index
    %c0_15 = arith.constant 0 : index
    %20 = vector.load %arg4[%c1, %c0_14, %c0_15] : memref<6x192x128xbf16, #tpu.memory_space<vmem>>, vector<1x192x128xbf16>
    %21 = vector.shape_cast %20 : vector<1x192x128xbf16> to vector<192x128xbf16>
    %cst_16 = arith.constant dense<0.000000e+00> : vector<16x128xf32>
    %22 = tpu.matmul %19, %21, %cst_16 {dimension_numbers = #tpu.dot_dimension_numbers<[1], [0], [0], [1], [0, 0, 1, 1], [], []>} : vector<16x192xbf16>, vector<192x128xbf16>, vector<16x128xf32> -> vector<16x128xf32>
    %23 = arith.addf %17, %22 : vector<16x128xf32>
    %cst_17 = arith.constant 0.000000e+00 : f32
    %24 = vector.broadcast %cst_17 : f32 to vector<16x128xf32>
    %25 = arith.maximumf %23, %24 : vector<16x128xf32>
    %26 = arith.truncf %25 : vector<16x128xf32> to vector<16x128xbf16>
    %27 = vector.extract_strided_slice %6 {offsets = [0, 256], sizes = [16, 128], strides = [1, 1]} : vector<16x512xf32> to vector<16x128xf32>
    %c0_18 = arith.constant 0 : index
    %c1_19 = arith.constant 1 : index
    %c0_20 = arith.constant 0 : index
    %28 = vector.load %arg1[%c0_18, %c1_19, %c0_20] : memref<1x24x192xbf16, #tpu.memory_space<vmem>>, vector<1x16x192xbf16>
    %29 = vector.shape_cast %28 : vector<1x16x192xbf16> to vector<16x192xbf16>
    %c2_21 = arith.constant 2 : index
    %c0_22 = arith.constant 0 : index
    %c0_23 = arith.constant 0 : index
    %30 = vector.load %arg4[%c2_21, %c0_22, %c0_23] : memref<6x192x128xbf16, #tpu.memory_space<vmem>>, vector<1x192x128xbf16>
    %31 = vector.shape_cast %30 : vector<1x192x128xbf16> to vector<192x128xbf16>
    %cst_24 = arith.constant dense<0.000000e+00> : vector<16x128xf32>
    %32 = tpu.matmul %29, %31, %cst_24 {dimension_numbers = #tpu.dot_dimension_numbers<[1], [0], [0], [1], [0, 0, 1, 1], [], []>} : vector<16x192xbf16>, vector<192x128xbf16>, vector<16x128xf32> -> vector<16x128xf32>
    %33 = arith.addf %27, %32 : vector<16x128xf32>
    %c0_25 = arith.constant 0 : index
    %c7 = arith.constant 7 : index
    %c0_26 = arith.constant 0 : index
    %34 = vector.load %arg1[%c0_25, %c7, %c0_26] : memref<1x24x192xbf16, #tpu.memory_space<vmem>>, vector<1x16x192xbf16>
    %35 = vector.shape_cast %34 : vector<1x16x192xbf16> to vector<16x192xbf16>
    %c3 = arith.constant 3 : index
    %c0_27 = arith.constant 0 : index
    %c0_28 = arith.constant 0 : index
    %36 = vector.load %arg4[%c3, %c0_27, %c0_28] : memref<6x192x128xbf16, #tpu.memory_space<vmem>>, vector<1x192x128xbf16>
    %37 = vector.shape_cast %36 : vector<1x192x128xbf16> to vector<192x128xbf16>
    %cst_29 = arith.constant dense<0.000000e+00> : vector<16x128xf32>
    %38 = tpu.matmul %35, %37, %cst_29 {dimension_numbers = #tpu.dot_dimension_numbers<[1], [0], [0], [1], [0, 0, 1, 1], [], []>} : vector<16x192xbf16>, vector<192x128xbf16>, vector<16x128xf32> -> vector<16x128xf32>
    %39 = arith.addf %33, %38 : vector<16x128xf32>
    %cst_30 = arith.constant 0.000000e+00 : f32
    %40 = vector.broadcast %cst_30 : f32 to vector<16x128xf32>
    %41 = arith.maximumf %39, %40 : vector<16x128xf32>
    %42 = arith.truncf %41 : vector<16x128xf32> to vector<16x128xbf16>
    %43 = vector.extract_strided_slice %6 {offsets = [0, 384], sizes = [16, 128], strides = [1, 1]} : vector<16x512xf32> to vector<16x128xf32>
    %c0_31 = arith.constant 0 : index
    %c0_32 = arith.constant 0 : index
    %c0_33 = arith.constant 0 : index
    %44 = vector.load %arg1[%c0_31, %c0_32, %c0_33] : memref<1x24x192xbf16, #tpu.memory_space<vmem>>, vector<1x16x192xbf16>
    %45 = vector.shape_cast %44 : vector<1x16x192xbf16> to vector<16x192xbf16>
    %c4_34 = arith.constant 4 : index
    %c0_35 = arith.constant 0 : index
    %c0_36 = arith.constant 0 : index
    %46 = vector.load %arg4[%c4_34, %c0_35, %c0_36] : memref<6x192x128xbf16, #tpu.memory_space<vmem>>, vector<1x192x128xbf16>
    %47 = vector.shape_cast %46 : vector<1x192x128xbf16> to vector<192x128xbf16>
    %cst_37 = arith.constant dense<0.000000e+00> : vector<16x128xf32>
    %48 = tpu.matmul %45, %47, %cst_37 {dimension_numbers = #tpu.dot_dimension_numbers<[1], [0], [0], [1], [0, 0, 1, 1], [], []>} : vector<16x192xbf16>, vector<192x128xbf16>, vector<16x128xf32> -> vector<16x128xf32>
    %49 = arith.addf %43, %48 : vector<16x128xf32>
    %c0_38 = arith.constant 0 : index
    %c8 = arith.constant 8 : index
    %c0_39 = arith.constant 0 : index
    %50 = vector.load %arg1[%c0_38, %c8, %c0_39] : memref<1x24x192xbf16, #tpu.memory_space<vmem>>, vector<1x16x192xbf16>
    %51 = vector.shape_cast %50 : vector<1x16x192xbf16> to vector<16x192xbf16>
    %c5 = arith.constant 5 : index
    %c0_40 = arith.constant 0 : index
    %c0_41 = arith.constant 0 : index
    %52 = vector.load %arg4[%c5, %c0_40, %c0_41] : memref<6x192x128xbf16, #tpu.memory_space<vmem>>, vector<1x192x128xbf16>
    %53 = vector.shape_cast %52 : vector<1x192x128xbf16> to vector<192x128xbf16>
    %cst_42 = arith.constant dense<0.000000e+00> : vector<16x128xf32>
    %54 = tpu.matmul %51, %53, %cst_42 {dimension_numbers = #tpu.dot_dimension_numbers<[1], [0], [0], [1], [0, 0, 1, 1], [], []>} : vector<16x192xbf16>, vector<192x128xbf16>, vector<16x128xf32> -> vector<16x128xf32>
    %55 = arith.addf %49, %54 : vector<16x128xf32>
    %cst_43 = arith.constant 0.000000e+00 : f32
    %56 = vector.broadcast %cst_43 : f32 to vector<16x128xf32>
    %57 = arith.maximumf %55, %56 : vector<16x128xf32>
    %58 = arith.truncf %57 : vector<16x128xf32> to vector<16x128xbf16>
    %59 = tpu.concatenate %10, %26, %42, %58 in 1 : vector<16x128xbf16>, vector<16x128xbf16>, vector<16x128xbf16>, vector<16x128xbf16> -> vector<16x512xbf16>
    %c0_44 = arith.constant 0 : index
    %c0_45 = arith.constant 0 : index
    %60 = vector.load %arg5[%c0_44, %c0_45] : memref<512x128xbf16, #tpu.memory_space<vmem>>, vector<512x128xbf16>
    %cst_46 = arith.constant dense<0.000000e+00> : vector<16x128xf32>
    %61 = tpu.matmul %59, %60, %cst_46 {dimension_numbers = #tpu.dot_dimension_numbers<[1], [0], [0], [1], [0, 0, 1, 1], [], []>} : vector<16x512xbf16>, vector<512x128xbf16>, vector<16x128xf32> -> vector<16x128xf32>
    %62 = arith.extf %1 : vector<16x192xbf16> to vector<16x192xf32>
    %cst_47 = arith.constant dense<0.000000e+00> : vector<192xf32>
    %63 = vector.multi_reduction <add>, %62, %cst_47 [0] : vector<16x192xf32> to vector<192xf32>
    %64 = vector.shape_cast %63 : vector<192xf32> to vector<1x192xf32>
    %c0_48 = arith.constant 0 : index
    %c0_49 = arith.constant 0 : index
    %65 = vector.load %arg6[%c0_48, %c0_49] : memref<192x8xf32, #tpu.memory_space<vmem>>, vector<192x8xf32>
    %cst_50 = arith.constant dense<0.000000e+00> : vector<1x8xf32>
    %66 = tpu.matmul %64, %65, %cst_50 {dimension_numbers = #tpu.dot_dimension_numbers<[1], [0], [0], [1], [0, 0, 1, 1], [], []>} : vector<1x192xf32>, vector<192x8xf32>, vector<1x8xf32> -> vector<1x8xf32>
    %c0_51 = arith.constant 0 : index
    %c0_52 = arith.constant 0 : index
    %67 = vector.load %arg7[%c0_51, %c0_52] : memref<1x8xf32, #tpu.memory_space<vmem>>, vector<1x8xf32>
    %68 = arith.addf %66, %67 : vector<1x8xf32>
    %cst_53 = arith.constant 0.000000e+00 : f32
    %69 = vector.broadcast %cst_53 : f32 to vector<1x8xf32>
    %70 = arith.maximumf %68, %69 : vector<1x8xf32>
    %c0_54 = arith.constant 0 : index
    %c0_55 = arith.constant 0 : index
    %71 = vector.load %arg8[%c0_54, %c0_55] : memref<8x128xf32, #tpu.memory_space<vmem>>, vector<8x128xf32>
    %cst_56 = arith.constant dense<0.000000e+00> : vector<1x128xf32>
    %72 = tpu.matmul %70, %71, %cst_56 {dimension_numbers = #tpu.dot_dimension_numbers<[1], [0], [0], [1], [0, 0, 1, 1], [], []>} : vector<1x8xf32>, vector<8x128xf32>, vector<1x128xf32> -> vector<1x128xf32>
    %c0_57 = arith.constant 0 : index
    %c0_58 = arith.constant 0 : index
    %73 = vector.load %arg9[%c0_57, %c0_58] : memref<1x128xf32, #tpu.memory_space<vmem>>, vector<1x128xf32>
    %74 = arith.addf %72, %73 : vector<1x128xf32>
    %75 = vector.broadcast %74 : vector<1x128xf32> to vector<16x128xf32>
    %76 = arith.addf %61, %75 : vector<16x128xf32>
    %cst_59 = arith.constant 0.000000e+00 : f32
    %77 = vector.broadcast %cst_59 : f32 to vector<16x128xf32>
    %78 = arith.maximumf %76, %77 : vector<16x128xf32>
    %c0_60 = arith.constant 0 : index
    %c0_61 = arith.constant 0 : index
    %c0_62 = arith.constant 0 : index
    %79 = vector.load %arg10[%c0_60, %c0_61, %c0_62] : memref<1x16x128xf32, #tpu.memory_space<vmem>>, vector<1x16x128xf32>
    %80 = vector.shape_cast %79 : vector<1x16x128xf32> to vector<16x128xf32>
    %81 = vector.shape_cast %78 : vector<16x128xf32> to vector<1x16x128xf32>
    tpu.vector_store %arg10[%c0_60, %c0_61, %c0_62], %81 {strides = array<i32>} : memref<1x16x128xf32, #tpu.memory_space<vmem>>, vector<1x16x128xf32>,
    return
  }
  func.func @transform_0(%arg0: i32) -> (i32, i32, i32) {
    %c0_i32 = arith.constant 0 : i32
    %c0_i32_0 = arith.constant 0 : i32
    %c0_i32_1 = arith.constant 0 : i32
    return %arg0, %c0_i32, %c0_i32_0 : i32, i32, i32
  }
  func.func @transform_1(%arg0: i32) -> (i32, i32) {
    %c0_i32 = arith.constant 0 : i32
    %c0_i32_0 = arith.constant 0 : i32
    %c0_i32_1 = arith.constant 0 : i32
    return %c0_i32, %c0_i32_0 : i32, i32
  }
  func.func @transform_2(%arg0: i32) -> (i32, i32) {
    %c0_i32 = arith.constant 0 : i32
    %c0_i32_0 = arith.constant 0 : i32
    %c0_i32_1 = arith.constant 0 : i32
    return %c0_i32, %c0_i32_0 : i32, i32
  }
  func.func @transform_3(%arg0: i32) -> (i32, i32, i32) {
    %c0_i32 = arith.constant 0 : i32
    %c0_i32_0 = arith.constant 0 : i32
    %c0_i32_1 = arith.constant 0 : i32
    %c0_i32_2 = arith.constant 0 : i32
    return %c0_i32, %c0_i32_0, %c0_i32_1 : i32, i32, i32
  }
  func.func @transform_4(%arg0: i32) -> (i32, i32) {
    %c0_i32 = arith.constant 0 : i32
    %c0_i32_0 = arith.constant 0 : i32
    %c0_i32_1 = arith.constant 0 : i32
    return %c0_i32, %c0_i32_0 : i32, i32
  }
  func.func @transform_5(%arg0: i32) -> (i32, i32) {
    %c0_i32 = arith.constant 0 : i32
    %c0_i32_0 = arith.constant 0 : i32
    %c0_i32_1 = arith.constant 0 : i32
    return %c0_i32, %c0_i32_0 : i32, i32
  }
  func.func @transform_6(%arg0: i32) -> (i32, i32) {
    %c0_i32 = arith.constant 0 : i32
    %c0_i32_0 = arith.constant 0 : i32
    %c0_i32_1 = arith.constant 0 : i32
    return %c0_i32, %c0_i32_0 : i32, i32
  }
  func.func @transform_7(%arg0: i32) -> (i32, i32) {
    %c0_i32 = arith.constant 0 : i32
    %c0_i32_0 = arith.constant 0 : i32
    %c0_i32_1 = arith.constant 0 : i32
    return %c0_i32, %c0_i32_0 : i32, i32
  }
  func.func @transform_8(%arg0: i32) -> (i32, i32) {
    %c0_i32 = arith.constant 0 : i32
    %c0_i32_0 = arith.constant 0 : i32
    %c0_i32_1 = arith.constant 0 : i32
    return %c0_i32, %c0_i32_0 : i32, i32
  }
  func.func @transform_9(%arg0: i32) -> (i32, i32, i32) {
    %c0_i32 = arith.constant 0 : i32
    %c0_i32_0 = arith.constant 0 : i32
    %c0_i32_1 = arith.constant 0 : i32
    return %arg0, %c0_i32, %c0_i32_0 : i32, i32, i32
  }
}

</mosaic_0001>

<llo_original>
// kernel: tpu_custom_call.1
$region0: #{tpu_custom_call.1}
  #allocation0 [shape = 'u32[]', space=smem, size = 0x4, offset = 0x4, fixed_abs, tag = 'smem constant byte address 0x4 - core index']
  #allocation1 [shape = 'u32[72,128]{1,0:T(1,128)}', space=vmem, size = 0x9000, scoped, tag = 'internal scratch']
  %s0 = inlined_call_operand.vmem [shape: bf16[2,24,192], index: 0, kind: input, shape index: {}]
  %s1 = inlined_call_operand.hbm [shape: bf16[192,512], index: 1, kind: input, shape index: {}]
  %s2 = inlined_call_operand.vmem [shape: f32[1,512], index: 2, kind: input, shape index: {}]
  %s3 = inlined_call_operand.hbm [shape: bf16[6,192,128], index: 3, kind: input, shape index: {}]
  %s4 = inlined_call_operand.hbm [shape: bf16[512,128], index: 4, kind: input, shape index: {}]
  %s5 = inlined_call_operand.vmem [shape: f32[192,8], index: 5, kind: input, shape index: {}]
  %s6 = inlined_call_operand.vmem [shape: f32[1,8], index: 6, kind: input, shape index: {}]
  %s7 = inlined_call_operand.vmem [shape: f32[8,128], index: 7, kind: input, shape index: {}]
  %s8 = inlined_call_operand.vmem [shape: f32[1,128], index: 8, kind: input, shape index: {}]
  %s9 = inlined_call_operand.hbm [shape: f32[2,16,128], index: 9, kind: output, shape index: {}]
  %s10 = sld [smem:[#allocation0]]
  $region81: #{tpu_custom_call.1} parent=0
    _
  %s12 = ssub.s32 1, %s10
  %s13 = scalar_select 0, %s12, %s10
  $region1: #{tpu_custom_call.1} parent=0
    #allocation2 [shape = 'u8[196608]{0}', space=vmem, size = 0x30000, scoped, tag = 'input window, operand 1, single buffered']
    #allocation3 [shape = 's32[2]{0}', space=sflag, size = 0x8, scoped, tag = 'scoped memory for tpu_custom_call.1']
    #allocation4 [shape = 's32[2]{0}', space=sflag, size = 0x8, scoped, tag = 'scoped memory for tpu_custom_call.1']
    #allocation5 [shape = 'u8[294912]{0}', space=vmem, size = 0x48000, scoped, tag = 'input window, operand 3, single buffered']
    #allocation6 [shape = 's32[1]{0}', space=sflag, size = 0x4, scoped, tag = 'scoped memory for tpu_custom_call.1']
    #allocation7 [shape = 'u8[131072]{0}', space=vmem, size = 0x20000, scoped, tag = 'input window, operand 4, single buffered']
    #allocation8 [shape = 'u8[16384]{0}', space=vmem, size = 0x4000, scoped, tag = 'output window, operand 0']
    %14 = vsyncpa [#allocation3], 0
    %15 = vsyncpa [#allocation6], 0
    %16 = vsyncpa [#allocation4], 0
    %s17 = scalar_lea.sflag [#allocation4], 1
    %18 = vsyncpa %s17, 0
    loop: start=0, step=1, limit=4
    $region2: #{tpu_custom_call.1} parent=1 // loop_pre_header
      _
    $region3: #{tpu_custom_call.1} parent=1 // loop_header
      %s20 = sphi 0, %s24
      %p21 = scmp.ge.s32.totalorder %s20, 4
      %s30 = sphi 0, %s32
      %s33 = sphi 0, %s30
      %s34 = sphi 0, %s33
      %s50 = sphi 0, %s34
      %s54 = sphi 0, %s54
      %s56 = sphi 0, %s54
      %s57 = sphi 0, %s56
      %s71 = sphi 0, %s57
      %s75 = sphi 0, %s75
      %s77 = sphi 0, %s75
      %s78 = sphi 0, %s77
      %s92 = sphi 0, %s78
      %s96 = sphi 0, %s96
      %s98 = sphi 0, %s96
      %s99 = sphi 0, %s98
      %s113 = sphi 0, %s99
      %s117 = sphi 0, %s117
      %s119 = sphi 0, %s117
      %s120 = sphi 0, %s119
      %s134 = sphi 0, %s120
      %s138 = sphi 0, %s138
      %s140 = sphi 0, %s138
      %s141 = sphi 0, %s140
      %s155 = sphi 0, %s141
      %s159 = sphi 0, %s159
      %s161 = sphi 0, %s159
      %s162 = sphi 0, %s161
      %s176 = sphi 0, %s162
      %s180 = sphi 0, %s180
      %s182 = sphi 0, %s180
      %s183 = sphi 0, %s182
      %s197 = sphi 0, %s183
      %s201 = sphi 0, %s201
      %s203 = sphi 0, %s201
      %s204 = sphi 0, %s203
      %s218 = sphi 0, %s204
      %s224 = sphi 0, %s226
      %s227 = sphi 0, %s224
      %s228 = sphi 0, %s227
      %s244 = sphi 0, %s228
    $region4: #{tpu_custom_call.1} parent=1 // loop_header_branch
      %23 = sbr.rel (%p21) target = $region8
    $region5: #{tpu_custom_call.1} parent=1 // loop_body
      %s25 = ssub.s32 %s20, 1
      %s26 = ssub.s32 %s20, 2
      %s27 = sadd.s32 %s20, 1
      %s28 = ssub.s32 %s20, %s27
      %p29 = scmp.eq.s32.totalorder %s28, 0
      %s31 = sadd.s32 %s30, 1
      %s32 = scalar_select %p29, %s30, %s31
      %p35 = pneg %p29
      %p36 = scmp.eq.s32.totalorder %s20, 1
      %p37 = por %p35, %p36
      %p38 = scmp.ne.s32.totalorder %s30, %s33
      %p39 = scmp.eq.s32.totalorder %s20, 0
      %p40 = por %p38, %p39
      %p41 = scmp.ne.s32.totalorder %s30, %s33
      %p42 = scmp.eq.s32.totalorder %s25, 1
      %p43 = por %p41, %p42
      %p44 = scmp.ne.s32.totalorder %s33, %s34
      %p45 = scmp.eq.s32.totalorder %s25, 0
      %p46 = por %p44, %p45
      %p47 = scmp.ne.s32.totalorder %s33, %s34
      %p48 = scmp.eq.s32.totalorder %s26, 1
      %p49 = por %p47, %p48
      %p51 = scmp.ne.s32.totalorder %s34, %s50
      %p52 = scmp.eq.s32.totalorder %s26, 0
      %p53 = por %p51, %p52
      %s55 = sadd.s32 %s54, 1
      %p58 = scmp.eq.s32.totalorder %s20, 1
      %p59 = scmp.ne.s32.totalorder %s54, %s56
      %p60 = scmp.eq.s32.totalorder %s20, 0
      %p61 = por %p59, %p60
      %p62 = scmp.ne.s32.totalorder %s54, %s56
      %p63 = scmp.eq.s32.totalorder %s25, 1
      %p64 = por %p62, %p63
      %p65 = scmp.ne.s32.totalorder %s56, %s57
      %p66 = scmp.eq.s32.totalorder %s25, 0
      %p67 = por %p65, %p66
      %p68 = scmp.ne.s32.totalorder %s56, %s57
      %p69 = scmp.eq.s32.totalorder %s26, 1
      %p70 = por %p68, %p69
      %p72 = scmp.ne.s32.totalorder %s57, %s71
      %p73 = scmp.eq.s32.totalorder %s26, 0
      %p74 = por %p72, %p73
      %s76 = sadd.s32 %s75, 1
      %p79 = scmp.eq.s32.totalorder %s20, 1
      %p80 = scmp.ne.s32.totalorder %s75, %s77
      %p81 = scmp.eq.s32.totalorder %s20, 0
      %p82 = por %p80, %p81
      %p83 = scmp.ne.s32.totalorder %s75, %s77
      %p84 = scmp.eq.s32.totalorder %s25, 1
      %p85 = por %p83, %p84
      %p86 = scmp.ne.s32.totalorder %s77, %s78
      %p87 = scmp.eq.s32.totalorder %s25, 0
      %p88 = por %p86, %p87
      %p89 = scmp.ne.s32.totalorder %s77, %s78
      %p90 = scmp.eq.s32.totalorder %s26, 1
      %p91 = por %p89, %p90
      %p93 = scmp.ne.s32.totalorder %s78, %s92
      %p94 = scmp.eq.s32.totalorder %s26, 0
      %p95 = por %p93, %p94
      %s97 = sadd.s32 %s96, 1
      %p100 = scmp.eq.s32.totalorder %s20, 1
      %p101 = scmp.ne.s32.totalorder %s96, %s98
      %p102 = scmp.eq.s32.totalorder %s20, 0
      %p103 = por %p101, %p102
      %p104 = scmp.ne.s32.totalorder %s96, %s98
      %p105 = scmp.eq.s32.totalorder %s25, 1
      %p106 = por %p104, %p105
      %p107 = scmp.ne.s32.totalorder %s98, %s99
      %p108 = scmp.eq.s32.totalorder %s25, 0
      %p109 = por %p107, %p108
      %p110 = scmp.ne.s32.totalorder %s98, %s99
      %p111 = scmp.eq.s32.totalorder %s26, 1
      %p112 = por %p110, %p111
      %p114 = scmp.ne.s32.totalorder %s99, %s113
      %p115 = scmp.eq.s32.totalorder %s26, 0
      %p116 = por %p114, %p115
      %s118 = sadd.s32 %s117, 1
      %p121 = scmp.eq.s32.totalorder %s20, 1
      %p122 = scmp.ne.s32.totalorder %s117, %s119
      %p123 = scmp.eq.s32.totalorder %s20, 0
      %p124 = por %p122, %p123
      %p125 = scmp.ne.s32.totalorder %s117, %s119
      %p126 = scmp.eq.s32.totalorder %s25, 1
      %p127 = por %p125, %p126
      %p128 = scmp.ne.s32.totalorder %s119, %s120
      %p129 = scmp.eq.s32.totalorder %s25, 0
      %p130 = por %p128, %p129
      %p131 = scmp.ne.s32.totalorder %s119, %s120
      %p132 = scmp.eq.s32.totalorder %s26, 1
      %p133 = por %p131, %p132
      %p135 = scmp.ne.s32.totalorder %s120, %s134
      %p136 = scmp.eq.s32.totalorder %s26, 0
      %p137 = por %p135, %p136
      %s139 = sadd.s32 %s138, 1
      %p142 = scmp.eq.s32.totalorder %s20, 1
      %p143 = scmp.ne.s32.totalorder %s138, %s140
      %p144 = scmp.eq.s32.totalorder %s20, 0
      %p145 = por %p143, %p144
      %p146 = scmp.ne.s32.totalorder %s138, %s140
      %p147 = scmp.eq.s32.totalorder %s25, 1
      %p148 = por %p146, %p147
      %p149 = scmp.ne.s32.totalorder %s140, %s141
      %p150 = scmp.eq.s32.totalorder %s25, 0
      %p151 = por %p149, %p150
      %p152 = scmp.ne.s32.totalorder %s140, %s141
      %p153 = scmp.eq.s32.totalorder %s26, 1
      %p154 = por %p152, %p153
      %p156 = scmp.ne.s32.totalorder %s141, %s155
      %p157 = scmp.eq.s32.totalorder %s26, 0
      %p158 = por %p156, %p157
      %s160 = sadd.s32 %s159, 1
      %p163 = scmp.eq.s32.totalorder %s20, 1
      %p164 = scmp.ne.s32.totalorder %s159, %s161
      %p165 = scmp.eq.s32.totalorder %s20, 0
      %p166 = por %p164, %p165
      %p167 = scmp.ne.s32.totalorder %s159, %s161
      %p168 = scmp.eq.s32.totalorder %s25, 1
      %p169 = por %p167, %p168
      %p170 = scmp.ne.s32.totalorder %s161, %s162
      %p171 = scmp.eq.s32.totalorder %s25, 0
      %p172 = por %p170, %p171
      %p173 = scmp.ne.s32.totalorder %s161, %s162
      %p174 = scmp.eq.s32.totalorder %s26, 1
      %p175 = por %p173, %p174
      %p177 = scmp.ne.s32.totalorder %s162, %s176
      %p178 = scmp.eq.s32.totalorder %s26, 0
      %p179 = por %p177, %p178
      %s181 = sadd.s32 %s180, 1
      %p184 = scmp.eq.s32.totalorder %s20, 1
      %p185 = scmp.ne.s32.totalorder %s180, %s182
      %p186 = scmp.eq.s32.totalorder %s20, 0
      %p187 = por %p185, %p186
      %p188 = scmp.ne.s32.totalorder %s180, %s182
      %p189 = scmp.eq.s32.totalorder %s25, 1
      %p190 = por %p188, %p189
      %p191 = scmp.ne.s32.totalorder %s182, %s183
      %p192 = scmp.eq.s32.totalorder %s25, 0
      %p193 = por %p191, %p192
      %p194 = scmp.ne.s32.totalorder %s182, %s183
      %p195 = scmp.eq.s32.totalorder %s26, 1
      %p196 = por %p194, %p195
      %p198 = scmp.ne.s32.totalorder %s183, %s197
      %p199 = scmp.eq.s32.totalorder %s26, 0
      %p200 = por %p198, %p199
      %s202 = sadd.s32 %s201, 1
      %p205 = scmp.eq.s32.totalorder %s20, 1
      %p206 = scmp.ne.s32.totalorder %s201, %s203
      %p207 = scmp.eq.s32.totalorder %s20, 0
      %p208 = por %p206, %p207
      %p209 = scmp.ne.s32.totalorder %s201, %s203
      %p210 = scmp.eq.s32.totalorder %s25, 1
      %p211 = por %p209, %p210
      %p212 = scmp.ne.s32.totalorder %s203, %s204
      %p213 = scmp.eq.s32.totalorder %s25, 0
      %p214 = por %p212, %p213
      %p215 = scmp.ne.s32.totalorder %s203, %s204
      %p216 = scmp.eq.s32.totalorder %s26, 1
      %p217 = por %p215, %p216
      %p219 = scmp.ne.s32.totalorder %s204, %s218
      %p220 = scmp.eq.s32.totalorder %s26, 0
      %p221 = por %p219, %p220
      %s222 = ssub.s32 %s20, %s27
      %p223 = scmp.eq.s32.totalorder %s222, 0
      %s225 = sadd.s32 %s224, 1
      %s226 = scalar_select %p223, %s224, %s225
      %p229 = pneg %p223
      %p230 = scmp.eq.s32.totalorder %s20, 1
      %p231 = por %p229, %p230
      %p232 = scmp.ne.s32.totalorder %s224, %s227
      %p233 = scmp.eq.s32.totalorder %s20, 0
      %p234 = por %p232, %p233
      %p235 = scmp.ne.s32.totalorder %s224, %s227
      %p236 = scmp.eq.s32.totalorder %s25, 1
      %p237 = por %p235, %p236
      %p238 = scmp.ne.s32.totalorder %s227, %s228
      %p239 = scmp.eq.s32.totalorder %s25, 0
      %p240 = por %p238, %p239
      %p241 = scmp.ne.s32.totalorder %s227, %s228
      %p242 = scmp.eq.s32.totalorder %s26, 1
      %p243 = por %p241, %p242
      %p245 = scmp.ne.s32.totalorder %s228, %s244
      %p246 = scmp.eq.s32.totalorder %s26, 0
      %p247 = por %p245, %p246
      %p248 = scmp.le.s32.totalorder 1, %s20
      %p249 = scmp.lt.s32.totalorder %s20, 3
      %p250 = pnand %p248, %p249
      %p251 = pneg %p250
      // Predicated region
      $region9: #{tpu_custom_call.1} parent=5 // pred_check
        _
      $region10: #{tpu_custom_call.1} parent=5 // pred_check_branch
        %253 = sbr.rel (%p250) target = $region12
      $region11: #{tpu_custom_call.1} parent=5 // pred_region
        %s254 = ssub.s32 %s20, 1
        // Predicated region
        $region13: #{tpu_custom_call.1} parent=11 // pred_check
          %p255 = pneg %p67
        $region14: #{tpu_custom_call.1} parent=11 // pred_check_branch
          %257 = sbr.rel (%p255) target = $region16
        $region15: #{tpu_custom_call.1} parent=11 // pred_region
          %259 = vsyncadd [#allocation3], 0
          %s260 = sshll.u32 %s1, 4
          %s261 = int_to_ptr.hbm [resolvable:$true] %s260
          %s262 = sshll.u32 [#allocation2], 4
          %s263 = int_to_ptr.vmem [resolvable:$true] %s262
          %268 = dma.hbm_to_vmem [thread:$0]  %s261, 6144, %s263, [#allocation3], 256, 256, 16
        $region16: #{tpu_custom_call.1} parent=11 // pred_fallthru
          _
        // Predicated region
        $region17: #{tpu_custom_call.1} parent=11 // pred_check
          %p269 = pneg %p88
        $region18: #{tpu_custom_call.1} parent=11 // pred_check_branch
          %271 = sbr.rel (%p269) target = $region20
        $region19: #{tpu_custom_call.1} parent=11 // pred_region
          _
        $region20: #{tpu_custom_call.1} parent=11 // pred_fallthru
          _
        // Predicated region
        $region21: #{tpu_custom_call.1} parent=11 // pred_check
          %p272 = pneg %p109
        $region22: #{tpu_custom_call.1} parent=11 // pred_check_branch
          %274 = sbr.rel (%p272) target = $region24
        $region23: #{tpu_custom_call.1} parent=11 // pred_region
          %276 = vsyncadd [#allocation6], 0
          %s277 = sshll.u32 %s3, 4
          %s278 = int_to_ptr.hbm [resolvable:$true] %s277
          %s279 = sshll.u32 [#allocation5], 4
          %s280 = int_to_ptr.vmem [resolvable:$true] %s279
          %285 = dma.hbm_to_vmem [thread:$0]  %s278, 9216, %s280, [#allocation6], 64, 64, 4
        $region24: #{tpu_custom_call.1} parent=11 // pred_fallthru
          _
        // Predicated region
        $region25: #{tpu_custom_call.1} parent=11 // pred_check
          %p286 = pneg %p130
        $region26: #{tpu_custom_call.1} parent=11 // pred_check_branch
          %288 = sbr.rel (%p286) target = $region28
        $region27: #{tpu_custom_call.1} parent=11 // pred_region
          %290 = vsyncadd [#allocation6], 0
          %s291 = sshll.u32 %s4, 4
          %s292 = int_to_ptr.hbm [resolvable:$true] %s291
          %s293 = sshll.u32 [#allocation7], 4
          %s294 = int_to_ptr.vmem [resolvable:$true] %s293
          %299 = dma.hbm_to_vmem [thread:$0]  %s292, 4096, %s294, [#allocation6], 64, 64, 4
        $region28: #{tpu_custom_call.1} parent=11 // pred_fallthru
          _
        // Predicated region
        $region29: #{tpu_custom_call.1} parent=11 // pred_check
          %p300 = pneg %p151
        $region30: #{tpu_custom_call.1} parent=11 // pred_check_branch
          %302 = sbr.rel (%p300) target = $region32
        $region31: #{tpu_custom_call.1} parent=11 // pred_region
          _
        $region32: #{tpu_custom_call.1} parent=11 // pred_fallthru
          _
        // Predicated region
        $region33: #{tpu_custom_call.1} parent=11 // pred_check
          %p303 = pneg %p172
        $region34: #{tpu_custom_call.1} parent=11 // pred_check_branch
          %305 = sbr.rel (%p303) target = $region36
        $region35: #{tpu_custom_call.1} parent=11 // pred_region
          _
        $region36: #{tpu_custom_call.1} parent=11 // pred_fallthru
          _
        // Predicated region
        $region37: #{tpu_custom_call.1} parent=11 // pred_check
          %p306 = pneg %p193
        $region38: #{tpu_custom_call.1} parent=11 // pred_check_branch
          %308 = sbr.rel (%p306) target = $region40
        $region39: #{tpu_custom_call.1} parent=11 // pred_region
          _
        $region40: #{tpu_custom_call.1} parent=11 // pred_fallthru
          _
        // Predicated region
        $region41: #{tpu_custom_call.1} parent=11 // pred_check
          %p309 = pneg %p214
        $region42: #{tpu_custom_call.1} parent=11 // pred_check_branch
          %311 = sbr.rel (%p309) target = $region44
        $region43: #{tpu_custom_call.1} parent=11 // pred_region
          _
        $region44: #{tpu_custom_call.1} parent=11 // pred_fallthru
          _
      $region12: #{tpu_custom_call.1} parent=5 // pred_fallthru
        _
      %p312 = scmp.lt.s32.totalorder %s20, 2
      // Predicated region
      $region45: #{tpu_custom_call.1} parent=5 // pred_check
        %p313 = pneg %p312
      $region46: #{tpu_custom_call.1} parent=5 // pred_check_branch
        %315 = sbr.rel (%p313) target = $region48
      $region47: #{tpu_custom_call.1} parent=5 // pred_region
        // Predicated region
        $region49: #{tpu_custom_call.1} parent=47 // pred_check
          %p316 = pneg %p40
        $region50: #{tpu_custom_call.1} parent=47 // pred_check_branch
          %318 = sbr.rel (%p316) target = $region52
        $region51: #{tpu_custom_call.1} parent=47 // pred_region
          %p319 = scmp.lt.s32.totalorder %s20, 1
          %s320 = scalar_select %p319, %s20, 1
          %s321 = smul.addr %s320, 6
          %s322 = smul.addr %s321, 4
          %s323 = scalar_lea.vmem %s0, %s322
        $region52: #{tpu_custom_call.1} parent=47 // pred_fallthru
          _
      $region48: #{tpu_custom_call.1} parent=5 // pred_fallthru
        _
      %p324 = scmp.le.s32.totalorder 1, %s20
      %p325 = scmp.lt.s32.totalorder %s20, 3
      %p326 = pnand %p324, %p325
      %p327 = pneg %p326
      // Predicated region
      $region53: #{tpu_custom_call.1} parent=5 // pred_check
        _
      $region54: #{tpu_custom_call.1} parent=5 // pred_check_branch
        %329 = sbr.rel (%p326) target = $region56
      $region55: #{tpu_custom_call.1} parent=5 // pred_region
        %s330 = ssub.s32 %s20, 1
        // Predicated region
        $region57: #{tpu_custom_call.1} parent=55 // pred_check
          %p331 = pneg %p67
        $region58: #{tpu_custom_call.1} parent=55 // pred_check_branch
          %333 = sbr.rel (%p331) target = $region60
        $region59: #{tpu_custom_call.1} parent=55 // pred_region
          %335 = dma.done [#allocation3], 6144
        $region60: #{tpu_custom_call.1} parent=55 // pred_fallthru
          _
        // Predicated region
        $region61: #{tpu_custom_call.1} parent=55 // pred_check
          %p336 = pneg %p109
        $region62: #{tpu_custom_call.1} parent=55 // pred_check_branch
          %338 = sbr.rel (%p336) target = $region64
        $region63: #{tpu_custom_call.1} parent=55 // pred_region
          %340 = dma.done [#allocation6], 9216
        $region64: #{tpu_custom_call.1} parent=55 // pred_fallthru
          _
        // Predicated region
        $region65: #{tpu_custom_call.1} parent=55 // pred_check
          %p341 = pneg %p130
        $region66: #{tpu_custom_call.1} parent=55 // pred_check_branch
          %343 = sbr.rel (%p341) target = $region68
        $region67: #{tpu_custom_call.1} parent=55 // pred_region
          %345 = dma.done [#allocation6], 4096
        $region68: #{tpu_custom_call.1} parent=55 // pred_fallthru
          _
        %p346 = scmp.lt.s32.totalorder %s25, 1
        %s347 = scalar_select %p346, %s25, 1
        %s348 = smul.addr %s347, 6
        %s349 = smul.addr %s348, 4
        %s350 = scalar_lea.vmem %s0, %s349
        %p351 = pneg %p46
        %p352 = pneg %p43
        %p353 = pneg %p67
        %p354 = pneg %p64
        %p355 = pneg %p88
        %p356 = pneg %p85
        %p357 = pneg %p109
        %p358 = pneg %p106
        %p359 = pneg %p130
        %p360 = pneg %p127
        %p361 = pneg %p151
        %p362 = pneg %p148
        %p363 = pneg %p172
        %p364 = pneg %p169
        %p365 = pneg %p193
        %p366 = pneg %p190
        %p367 = pneg %p214
        %p368 = pneg %p211
        %p369 = pneg %p240
        %p370 = pneg %p237
        %s371 = sand.u32 %s227, 1
        %s372 = scalar_lea.sflag [#allocation4], %s371
        %s373 = sand.u32 %s227, 1
        %s374 = smul.addr %s373, 16
        %s375 = scalar_lea.vmem [#allocation8], %s374
        %p376 = scmp.lt.s32.totalorder %s25, 1
        %s377 = scalar_select %p376, %s25, 1
        %s378 = smul.addr %s377, 6
        %s379 = smul.addr %s378, 4
        %s380 = scalar_lea.vmem %s0, %s379
        %v382 = vld [vmem:[%s380] sm:$0xcc]
        %v383 = vld [vmem:[%s380 + $0x8] sm:$0xff]
        %v384 = vld [vmem:[%s380 + $0x10] sm:$0x33]
        %v385 = vld [vmem:[#allocation2] sm:$0xff]
        %v386 = vld [vmem:[#allocation2 + $0x8] sm:$0xff]
        %v387 = vld [vmem:[#allocation2 + $0x10] sm:$0xff]
        %v388 = vld [vmem:[#allocation2 + $0x18] sm:$0xff]
        %v389 = vld [vmem:[#allocation2 + $0x20] sm:$0xff]
        %v390 = vld [vmem:[#allocation2 + $0x28] sm:$0xff]
        %v391 = vld [vmem:[#allocation2 + $0x30] sm:$0xff]
        %v392 = vld [vmem:[#allocation2 + $0x38] sm:$0xff]
        %v393 = vld [vmem:[#allocation2 + $0x40] sm:$0xff]
        %v394 = vld [vmem:[#allocation2 + $0x48] sm:$0xff]
        %v395 = vld [vmem:[#allocation2 + $0x50] sm:$0xff]
        %v396 = vld [vmem:[#allocation2 + $0x58] sm:$0xff]
        %v397 = vld [vmem:[#allocation2 + $0x60] sm:$0xff]
        %v398 = vld [vmem:[#allocation2 + $0x68] sm:$0xff]
        %v399 = vld [vmem:[#allocation2 + $0x70] sm:$0xff]
        %v400 = vld [vmem:[#allocation2 + $0x78] sm:$0xff]
        %v401 = vld [vmem:[#allocation2 + $0x80] sm:$0xff]
        %v402 = vld [vmem:[#allocation2 + $0x88] sm:$0xff]
        %v403 = vld [vmem:[#allocation2 + $0x90] sm:$0xff]
        %v404 = vld [vmem:[#allocation2 + $0x98] sm:$0xff]
        %v405 = vld [vmem:[#allocation2 + $0xa0] sm:$0xff]
        %v406 = vld [vmem:[#allocation2 + $0xa8] sm:$0xff]
        %v407 = vld [vmem:[#allocation2 + $0xb0] sm:$0xff]
        %v408 = vld [vmem:[#allocation2 + $0xb8] sm:$0xff]
        %v409 = vld [vmem:[#allocation2 + $0xc0] sm:$0xff]
        %v410 = vld [vmem:[#allocation2 + $0xc8] sm:$0xff]
        %v411 = vld [vmem:[#allocation2 + $0xd0] sm:$0xff]
        %v412 = vld [vmem:[#allocation2 + $0xd8] sm:$0xff]
        %v413 = vld [vmem:[#allocation2 + $0xe0] sm:$0xff]
        %v414 = vld [vmem:[#allocation2 + $0xe8] sm:$0xff]
        %v415 = vld [vmem:[#allocation2 + $0xf0] sm:$0xff]
        %v416 = vld [vmem:[#allocation2 + $0xf8] sm:$0xff]
        %v417 = vld [vmem:[#allocation2 + $0x100] sm:$0xff]
        %v418 = vld [vmem:[#allocation2 + $0x108] sm:$0xff]
        %v419 = vld [vmem:[#allocation2 + $0x110] sm:$0xff]
        %v420 = vld [vmem:[#allocation2 + $0x118] sm:$0xff]
        %v421 = vld [vmem:[#allocation2 + $0x120] sm:$0xff]
        %v422 = vld [vmem:[#allocation2 + $0x128] sm:$0xff]
        %v423 = vld [vmem:[#allocation2 + $0x130] sm:$0xff]
        %v424 = vld [vmem:[#allocation2 + $0x138] sm:$0xff]
        %v425 = vld [vmem:[#allocation2 + $0x140] sm:$0xff]
        %v426 = vld [vmem:[#allocation2 + $0x148] sm:$0xff]
        %v427 = vld [vmem:[#allocation2 + $0x150] sm:$0xff]
        %v428 = vld [vmem:[#allocation2 + $0x158] sm:$0xff]
        %v429 = vld [vmem:[#allocation2 + $0x160] sm:$0xff]
        %v430 = vld [vmem:[#allocation2 + $0x168] sm:$0xff]
        %v431 = vld [vmem:[#allocation2 + $0x170] sm:$0xff]
        %v432 = vld [vmem:[#allocation2 + $0x178] sm:$0xff]
        %v433 = vld [vmem:[%s2] sm:$0xf]
        %v435 = vperm.slane %v433, 0
        %v436 = vperm.slane %v433, 1
        %v437 = vperm.slane %v433, 2
        %v438 = vperm.slane %v433, 3
        %v446 = vunpack.c.l.b16 %v382
        %v447 = vunpack.c.h.b16 %v382
        %v448 = vunpack.c.l.b16 %v383
        %v449 = vunpack.c.h.b16 %v383
        %v450 = vunpack.c.l.b16 %v384
        %v451 = vunpack.c.h.b16 %v384
        %v452 = vpack.c.b16 %v448, %v446
        %v453 = vpack.c.b16 %v449, %v447
        %v454 = vpack.c.b16 %v450, %v450
        %v455 = vpack.c.b16 %v451, %v451
        %vm456 = vcmask 1045504
        %v457 = vrot.slane %v452, 2
        %v458 = vrot.slane %v454, 2
        %v459 = vsel %vm456, %v457, %v458
        %v460 = vrot.slane %v453, 2
        %v461 = vrot.slane %v455, 2
        %v462 = vsel %vm456, %v460, %v461
        %v512 = vunpack.c.l.b16 %v385
        %v513 = vunpack.c.h.b16 %v385
        %v514 = vunpack.c.l.b16 %v386
        %v515 = vunpack.c.h.b16 %v386
        %v516 = vunpack.c.l.b16 %v387
        %v517 = vunpack.c.h.b16 %v387
        %v518 = vunpack.c.l.b16 %v388
        %v519 = vunpack.c.h.b16 %v388
        %v520 = vunpack.c.l.b16 %v389
        %v521 = vunpack.c.h.b16 %v389
        %v522 = vunpack.c.l.b16 %v390
        %v523 = vunpack.c.h.b16 %v390
        %v524 = vunpack.c.l.b16 %v391
        %v525 = vunpack.c.h.b16 %v391
        %v526 = vunpack.c.l.b16 %v392
        %v527 = vunpack.c.h.b16 %v392
        %v528 = vunpack.c.l.b16 %v393
        %v529 = vunpack.c.h.b16 %v393
        %v530 = vunpack.c.l.b16 %v394
        %v531 = vunpack.c.h.b16 %v394
        %v532 = vunpack.c.l.b16 %v395
        %v533 = vunpack.c.h.b16 %v395
        %v534 = vunpack.c.l.b16 %v396
        %v535 = vunpack.c.h.b16 %v396
        %v536 = vunpack.c.l.b16 %v397
        %v537 = vunpack.c.h.b16 %v397
        %v538 = vunpack.c.l.b16 %v398
        %v539 = vunpack.c.h.b16 %v398
        %v540 = vunpack.c.l.b16 %v399
        %v541 = vunpack.c.h.b16 %v399
        %v542 = vunpack.c.l.b16 %v400
        %v543 = vunpack.c.h.b16 %v400
        %v544 = vunpack.c.l.b16 %v401
        %v545 = vunpack.c.h.b16 %v401
        %v546 = vunpack.c.l.b16 %v402
        %v547 = vunpack.c.h.b16 %v402
        %v548 = vunpack.c.l.b16 %v403
        %v549 = vunpack.c.h.b16 %v403
        %v550 = vunpack.c.l.b16 %v404
        %v551 = vunpack.c.h.b16 %v404
        %v552 = vunpack.c.l.b16 %v405
        %v553 = vunpack.c.h.b16 %v405
        %v554 = vunpack.c.l.b16 %v406
        %v555 = vunpack.c.h.b16 %v406
        %v556 = vunpack.c.l.b16 %v407
        %v557 = vunpack.c.h.b16 %v407
        %v558 = vunpack.c.l.b16 %v408
        %v559 = vunpack.c.h.b16 %v408
        %v560 = vunpack.c.l.b16 %v409
        %v561 = vunpack.c.h.b16 %v409
        %v562 = vunpack.c.l.b16 %v410
        %v563 = vunpack.c.h.b16 %v410
        %v564 = vunpack.c.l.b16 %v411
        %v565 = vunpack.c.h.b16 %v411
        %v566 = vunpack.c.l.b16 %v412
        %v567 = vunpack.c.h.b16 %v412
        %v568 = vunpack.c.l.b16 %v413
        %v569 = vunpack.c.h.b16 %v413
        %v570 = vunpack.c.l.b16 %v414
        %v571 = vunpack.c.h.b16 %v414
        %v572 = vunpack.c.l.b16 %v415
        %v573 = vunpack.c.h.b16 %v415
        %v574 = vunpack.c.l.b16 %v416
        %v575 = vunpack.c.h.b16 %v416
        %v576 = vunpack.c.l.b16 %v417
        %v577 = vunpack.c.h.b16 %v417
        %v578 = vunpack.c.l.b16 %v418
        %v579 = vunpack.c.h.b16 %v418
        %v580 = vunpack.c.l.b16 %v419
        %v581 = vunpack.c.h.b16 %v419
        %v582 = vunpack.c.l.b16 %v420
        %v583 = vunpack.c.h.b16 %v420
        %v584 = vunpack.c.l.b16 %v421
        %v585 = vunpack.c.h.b16 %v421
        %v586 = vunpack.c.l.b16 %v422
        %v587 = vunpack.c.h.b16 %v422
        %v588 = vunpack.c.l.b16 %v423
        %v589 = vunpack.c.h.b16 %v423
        %v590 = vunpack.c.l.b16 %v424
        %v591 = vunpack.c.h.b16 %v424
        %v592 = vunpack.c.l.b16 %v425
        %v593 = vunpack.c.h.b16 %v425
        %v594 = vunpack.c.l.b16 %v426
        %v595 = vunpack.c.h.b16 %v426
        %v596 = vunpack.c.l.b16 %v427
        %v597 = vunpack.c.h.b16 %v427
        %v598 = vunpack.c.l.b16 %v428
        %v599 = vunpack.c.h.b16 %v428
        %v600 = vunpack.c.l.b16 %v429
        %v601 = vunpack.c.h.b16 %v429
        %v602 = vunpack.c.l.b16 %v430
        %v603 = vunpack.c.h.b16 %v430
        %v604 = vunpack.c.l.b16 %v431
        %v605 = vunpack.c.h.b16 %v431
        %v606 = vunpack.c.l.b16 %v432
        %v607 = vunpack.c.h.b16 %v432
        %v608 = vpack.c.b16 %v516, %v512
        %v609 = vpack.c.b16 %v517, %v513
        %v610 = vpack.c.b16 %v518, %v514
        %v611 = vpack.c.b16 %v519, %v515
        %v612 = vpack.c.b16 %v524, %v520
        %v613 = vpack.c.b16 %v525, %v521
        %v614 = vpack.c.b16 %v526, %v522
        %v615 = vpack.c.b16 %v527, %v523
        %v616 = vpack.c.b16 %v532, %v528
        %v617 = vpack.c.b16 %v533, %v529
        %v618 = vpack.c.b16 %v534, %v530
        %v619 = vpack.c.b16 %v535, %v531
        %v620 = vpack.c.b16 %v540, %v536
        %v621 = vpack.c.b16 %v541, %v537
        %v622 = vpack.c.b16 %v542, %v538
        %v623 = vpack.c.b16 %v543, %v539
        %v624 = vpack.c.b16 %v548, %v544
        %v625 = vpack.c.b16 %v549, %v545
        %v626 = vpack.c.b16 %v550, %v546
        %v627 = vpack.c.b16 %v551, %v547
        %v628 = vpack.c.b16 %v556, %v552
        %v629 = vpack.c.b16 %v557, %v553
        %v630 = vpack.c.b16 %v558, %v554
        %v631 = vpack.c.b16 %v559, %v555
        %v632 = vpack.c.b16 %v564, %v560
        %v633 = vpack.c.b16 %v565, %v561
        %v634 = vpack.c.b16 %v566, %v562
        %v635 = vpack.c.b16 %v567, %v563
        %v636 = vpack.c.b16 %v572, %v568
        %v637 = vpack.c.b16 %v573, %v569
        %v638 = vpack.c.b16 %v574, %v570
        %v639 = vpack.c.b16 %v575, %v571
        %v640 = vpack.c.b16 %v580, %v576
        %v641 = vpack.c.b16 %v581, %v577
        %v642 = vpack.c.b16 %v582, %v578
        %v643 = vpack.c.b16 %v583, %v579
        %v644 = vpack.c.b16 %v588, %v584
        %v645 = vpack.c.b16 %v589, %v585
        %v646 = vpack.c.b16 %v590, %v586
        %v647 = vpack.c.b16 %v591, %v587
        %v648 = vpack.c.b16 %v596, %v592
        %v649 = vpack.c.b16 %v597, %v593
        %v650 = vpack.c.b16 %v598, %v594
        %v651 = vpack.c.b16 %v599, %v595
        %v652 = vpack.c.b16 %v604, %v600
        %v653 = vpack.c.b16 %v605, %v601
        %v654 = vpack.c.b16 %v606, %v602
        %v655 = vpack.c.b16 %v607, %v603
        %vm704 = vcmask 523264
        %v706 = vsel %vm704, %v462, 0
        %708 = vmatpush.bf16.msra.mxu0 %v636
        %709 = vmatpush.bf16.msra.mxu0 %v632
        %710 = vmatpush.bf16.msra.mxu0 %v628
        %711 = vmatpush.bf16.msra.mxu0 %v624
        %712 = vmatpush.bf16.msra.mxu0 %v620
        %713 = vmatpush.bf16.msra.mxu0 %v616
        %714 = vmatpush.bf16.msra.mxu0 %v612
        %715 = vmatpush.bf16.msra.mxu0 %v608
        %716 = vmatmul.bf16.gmra.mxu0 %v459
        %v717 = vpop.f32.mrf.mxu0
        %v718 = vadd.f32 %v435, %v717
        %v719 = vpop.f32.mrf.mxu0
        %v720 = vadd.f32 %v435, %v719
        %721 = vdwg.mxu0
        %722 = vmatpush.bf16.msra.mxu0 0
        %723 = vmatpush.bf16.msra.mxu0 0
        %724 = vmatpush.bf16.msra.mxu0 0
        %725 = vmatpush.bf16.msra.mxu0 0
        %726 = vmatpush.bf16.msra.mxu0 %v652
        %727 = vmatpush.bf16.msra.mxu0 %v648
        %728 = vmatpush.bf16.msra.mxu0 %v644
        %729 = vmatpush.bf16.msra.mxu0 %v640
        %730 = vmatmul.bf16.gmra.mxu0 %v706
        %v731 = vpop.f32.mrf.mxu0
        %v732 = vadd.f32 %v718, %v731
        %v733 = vpop.f32.mrf.mxu0
        %v734 = vadd.f32 %v720, %v733
        %735 = vdwg.mxu0
        %736 = vmatpush.bf16.msra.mxu0 %v637
        %737 = vmatpush.bf16.msra.mxu0 %v633
        %738 = vmatpush.bf16.msra.mxu0 %v629
        %739 = vmatpush.bf16.msra.mxu0 %v625
        %740 = vmatpush.bf16.msra.mxu0 %v621
        %741 = vmatpush.bf16.msra.mxu0 %v617
        %742 = vmatpush.bf16.msra.mxu0 %v613
        %743 = vmatpush.bf16.msra.mxu0 %v609
        %744 = vmatmul.bf16.gmra.mxu0 %v459
        %v745 = vpop.f32.mrf.mxu0
        %v746 = vadd.f32 %v436, %v745
        %v747 = vpop.f32.mrf.mxu0
        %v748 = vadd.f32 %v436, %v747
        %749 = vdwg.mxu0
        %750 = vmatpush.bf16.msra.mxu0 0
        %751 = vmatpush.bf16.msra.mxu0 0
        %752 = vmatpush.bf16.msra.mxu0 0
        %753 = vmatpush.bf16.msra.mxu0 0
        %754 = vmatpush.bf16.msra.mxu0 %v653
        %755 = vmatpush.bf16.msra.mxu0 %v649
        %756 = vmatpush.bf16.msra.mxu0 %v645
        %757 = vmatpush.bf16.msra.mxu0 %v641
        %758 = vmatmul.bf16.gmra.mxu0 %v706
        %v759 = vpop.f32.mrf.mxu0
        %v760 = vadd.f32 %v746, %v759
        %v761 = vpop.f32.mrf.mxu0
        %v762 = vadd.f32 %v748, %v761
        %763 = vdwg.mxu0
        %764 = vmatpush.bf16.msra.mxu0 %v638
        %765 = vmatpush.bf16.msra.mxu0 %v634
        %766 = vmatpush.bf16.msra.mxu0 %v630
        %767 = vmatpush.bf16.msra.mxu0 %v626
        %768 = vmatpush.bf16.msra.mxu0 %v622
        %769 = vmatpush.bf16.msra.mxu0 %v618
        %770 = vmatpush.bf16.msra.mxu0 %v614
        %771 = vmatpush.bf16.msra.mxu0 %v610
        %772 = vmatmul.bf16.gmra.mxu0 %v459
        %v773 = vpop.f32.mrf.mxu0
        %v774 = vadd.f32 %v437, %v773
        %v775 = vpop.f32.mrf.mxu0
        %v776 = vadd.f32 %v437, %v775
        %777 = vdwg.mxu0
        %778 = vmatpush.bf16.msra.mxu0 0
        %779 = vmatpush.bf16.msra.mxu0 0
        %780 = vmatpush.bf16.msra.mxu0 0
        %781 = vmatpush.bf16.msra.mxu0 0
        %782 = vmatpush.bf16.msra.mxu0 %v654
        %783 = vmatpush.bf16.msra.mxu0 %v650
        %784 = vmatpush.bf16.msra.mxu0 %v646
        %785 = vmatpush.bf16.msra.mxu0 %v642
        %786 = vmatmul.bf16.gmra.mxu0 %v706
        %v787 = vpop.f32.mrf.mxu0
        %v788 = vadd.f32 %v774, %v787
        %v789 = vpop.f32.mrf.mxu0
        %v790 = vadd.f32 %v776, %v789
        %791 = vdwg.mxu0
        %792 = vmatpush.bf16.msra.mxu0 %v639
        %793 = vmatpush.bf16.msra.mxu0 %v635
        %794 = vmatpush.bf16.msra.mxu0 %v631
        %795 = vmatpush.bf16.msra.mxu0 %v627
        %796 = vmatpush.bf16.msra.mxu0 %v623
        %797 = vmatpush.bf16.msra.mxu0 %v619
        %798 = vmatpush.bf16.msra.mxu0 %v615
        %799 = vmatpush.bf16.msra.mxu0 %v611
        %800 = vmatmul.bf16.gmra.mxu0 %v459
        %v801 = vpop.f32.mrf.mxu0
        %v802 = vadd.f32 %v438, %v801
        %v803 = vpop.f32.mrf.mxu0
        %v804 = vadd.f32 %v438, %v803
        %805 = vdwg.mxu0
        %806 = vmatpush.bf16.msra.mxu0 0
        %807 = vmatpush.bf16.msra.mxu0 0
        %808 = vmatpush.bf16.msra.mxu0 0
        %809 = vmatpush.bf16.msra.mxu0 0
        %810 = vmatpush.bf16.msra.mxu0 %v655
        %811 = vmatpush.bf16.msra.mxu0 %v651
        %812 = vmatpush.bf16.msra.mxu0 %v647
        %813 = vmatpush.bf16.msra.mxu0 %v643
        %814 = vmatmul.bf16.gmra.mxu0 %v706
        %v815 = vpop.f32.mrf.mxu0
        %v816 = vadd.f32 %v802, %v815
        %v817 = vpop.f32.mrf.mxu0
        %v818 = vadd.f32 %v804, %v817
        %819 = vdwg.mxu0
        %v820 = vmax.f32 %v732, 0.0
        %v821 = vmax.f32 %v734, 0.0
        %v822 = vpack.c.bf16 %v820, %v820
        %v823 = vpack.c.bf16 %v821, %v821
        %v824 = vld [vmem:[%s380] sm:$0xee]
        %v825 = vld [vmem:[%s380 + $0x10] sm:$0x11]
        %v826 = vld [vmem:[#allocation5] sm:$0xf]
        %v827 = vld [vmem:[#allocation5 + $0x4] sm:$0xf]
        %v828 = vld [vmem:[#allocation5 + $0x8] sm:$0xf]
        %v829 = vld [vmem:[#allocation5 + $0xc] sm:$0xf]
        %v830 = vld [vmem:[#allocation5 + $0x10] sm:$0xf]
        %v831 = vld [vmem:[#allocation5 + $0x14] sm:$0xf]
        %v832 = vld [vmem:[#allocation5 + $0x18] sm:$0xf]
        %v833 = vld [vmem:[#allocation5 + $0x1c] sm:$0xf]
        %v834 = vld [vmem:[#allocation5 + $0x20] sm:$0xf]
        %v835 = vld [vmem:[#allocation5 + $0x24] sm:$0xf]
        %v836 = vld [vmem:[#allocation5 + $0x28] sm:$0xf]
        %v837 = vld [vmem:[#allocation5 + $0x2c] sm:$0xf]
        %v838 = vld [vmem:[#allocation5 + $0x30] sm:$0xf]
        %v839 = vld [vmem:[#allocation5 + $0x34] sm:$0xf]
        %v840 = vld [vmem:[#allocation5 + $0x38] sm:$0xf]
        %v841 = vld [vmem:[#allocation5 + $0x3c] sm:$0xf]
        %v842 = vld [vmem:[#allocation5 + $0x40] sm:$0xf]
        %v843 = vld [vmem:[#allocation5 + $0x44] sm:$0xf]
        %v844 = vld [vmem:[#allocation5 + $0x48] sm:$0xf]
        %v845 = vld [vmem:[#allocation5 + $0x4c] sm:$0xf]
        %v846 = vld [vmem:[#allocation5 + $0x50] sm:$0xf]
        %v847 = vld [vmem:[#allocation5 + $0x54] sm:$0xf]
        %v848 = vld [vmem:[#allocation5 + $0x58] sm:$0xf]
        %v849 = vld [vmem:[#allocation5 + $0x5c] sm:$0xf]
        %v852 = vunpack.c.l.b16 %v824
        %v853 = vunpack.c.h.b16 %v824
        %v854 = vunpack.c.l.b16 %v825
        %v855 = vunpack.c.h.b16 %v825
        %v856 = vpack.c.b16 %v448, %v852
        %v857 = vpack.c.b16 %v449, %v853
        %v858 = vpack.c.b16 %v854, %v854
        %v859 = vpack.c.b16 %v855, %v855
        %vm860 = vcmask 1046528
        %v861 = vrot.slane %v856, 1
        %v862 = vrot.slane %v858, 1
        %v863 = vsel %vm860, %v861, %v862
        %v864 = vrot.slane %v857, 1
        %v865 = vrot.slane %v859, 1
        %v866 = vsel %vm860, %v864, %v865
        %v892 = vunpack.c.l.b16 %v826
        %v893 = vunpack.c.l.b16 %v827
        %v894 = vunpack.c.l.b16 %v828
        %v895 = vunpack.c.l.b16 %v829
        %v896 = vunpack.c.l.b16 %v830
        %v897 = vunpack.c.l.b16 %v831
        %v898 = vunpack.c.l.b16 %v832
        %v899 = vunpack.c.l.b16 %v833
        %v900 = vunpack.c.l.b16 %v834
        %v901 = vunpack.c.l.b16 %v835
        %v902 = vunpack.c.l.b16 %v836
        %v903 = vunpack.c.l.b16 %v837
        %v904 = vunpack.c.l.b16 %v838
        %v905 = vunpack.c.l.b16 %v839
        %v906 = vunpack.c.l.b16 %v840
        %v907 = vunpack.c.l.b16 %v841
        %v908 = vunpack.c.l.b16 %v842
        %v909 = vunpack.c.l.b16 %v843
        %v910 = vunpack.c.l.b16 %v844
        %v911 = vunpack.c.l.b16 %v845
        %v912 = vunpack.c.l.b16 %v846
        %v913 = vunpack.c.l.b16 %v847
        %v914 = vunpack.c.l.b16 %v848
        %v915 = vunpack.c.l.b16 %v849
        %v916 = vpack.c.b16 %v893, %v892
        %v917 = vpack.c.b16 %v895, %v894
        %v918 = vpack.c.b16 %v897, %v896
        %v919 = vpack.c.b16 %v899, %v898
        %v920 = vpack.c.b16 %v901, %v900
        %v921 = vpack.c.b16 %v903, %v902
        %v922 = vpack.c.b16 %v905, %v904
        %v923 = vpack.c.b16 %v907, %v906
        %v924 = vpack.c.b16 %v909, %v908
        %v925 = vpack.c.b16 %v911, %v910
        %v926 = vpack.c.b16 %v913, %v912
        %v927 = vpack.c.b16 %v915, %v914
        %v941 = vsel %vm704, %v866, 0
        %943 = vmatpush.bf16.msra.mxu0 %v923
        %944 = vmatpush.bf16.msra.mxu0 %v922
        %945 = vmatpush.bf16.msra.mxu0 %v921
        %946 = vmatpush.bf16.msra.mxu0 %v920
        %947 = vmatpush.bf16.msra.mxu0 %v919
        %948 = vmatpush.bf16.msra.mxu0 %v918
        %949 = vmatpush.bf16.msra.mxu0 %v917
        %950 = vmatpush.bf16.msra.mxu0 %v916
        %951 = vmatmul.bf16.gmra.mxu0 %v863
        %v952 = vpop.f32.mrf.mxu0
        %v953 = vadd.f32 0.0, %v952
        %v954 = vpop.f32.mrf.mxu0
        %v955 = vadd.f32 0.0, %v954
        %956 = vdwg.mxu0
        %957 = vmatpush.bf16.msra.mxu0 0
        %958 = vmatpush.bf16.msra.mxu0 0
        %959 = vmatpush.bf16.msra.mxu0 0
        %960 = vmatpush.bf16.msra.mxu0 0
        %961 = vmatpush.bf16.msra.mxu0 %v927
        %962 = vmatpush.bf16.msra.mxu0 %v926
        %963 = vmatpush.bf16.msra.mxu0 %v925
        %964 = vmatpush.bf16.msra.mxu0 %v924
        %965 = vmatmul.bf16.gmra.mxu0 %v941
        %v966 = vpop.f32.mrf.mxu0
        %v967 = vadd.f32 %v953, %v966
        %v968 = vpop.f32.mrf.mxu0
        %v969 = vadd.f32 %v955, %v968
        %970 = vdwg.mxu0
        %v971 = vadd.f32 %v760, %v967
        %v972 = vadd.f32 %v762, %v969
        %v973 = vld [vmem:[%s380] sm:$0x88]
        %v974 = vld [vmem:[%s380 + $0x10] sm:$0x77]
        %s975 = scalar_lea.vmem [#allocation5], 96
        %v976 = vld [vmem:[%s975] sm:$0xf]
        %v977 = vld [vmem:[%s975 + $0x4] sm:$0xf]
        %v978 = vld [vmem:[%s975 + $0x8] sm:$0xf]
        %v979 = vld [vmem:[%s975 + $0xc] sm:$0xf]
        %v980 = vld [vmem:[%s975 + $0x10] sm:$0xf]
        %v981 = vld [vmem:[%s975 + $0x14] sm:$0xf]
        %v982 = vld [vmem:[%s975 + $0x18] sm:$0xf]
        %v983 = vld [vmem:[%s975 + $0x1c] sm:$0xf]
        %v984 = vld [vmem:[%s975 + $0x20] sm:$0xf]
        %v985 = vld [vmem:[%s975 + $0x24] sm:$0xf]
        %v986 = vld [vmem:[%s975 + $0x28] sm:$0xf]
        %v987 = vld [vmem:[%s975 + $0x2c] sm:$0xf]
        %v988 = vld [vmem:[%s975 + $0x30] sm:$0xf]
        %v989 = vld [vmem:[%s975 + $0x34] sm:$0xf]
        %v990 = vld [vmem:[%s975 + $0x38] sm:$0xf]
        %v991 = vld [vmem:[%s975 + $0x3c] sm:$0xf]
        %v992 = vld [vmem:[%s975 + $0x40] sm:$0xf]
        %v993 = vld [vmem:[%s975 + $0x44] sm:$0xf]
        %v994 = vld [vmem:[%s975 + $0x48] sm:$0xf]
        %v995 = vld [vmem:[%s975 + $0x4c] sm:$0xf]
        %v996 = vld [vmem:[%s975 + $0x50] sm:$0xf]
        %v997 = vld [vmem:[%s975 + $0x54] sm:$0xf]
        %v998 = vld [vmem:[%s975 + $0x58] sm:$0xf]
        %v999 = vld [vmem:[%s975 + $0x5c] sm:$0xf]
        %v1002 = vunpack.c.l.b16 %v973
        %v1003 = vunpack.c.h.b16 %v973
        %v1004 = vunpack.c.l.b16 %v974
        %v1005 = vunpack.c.h.b16 %v974
        %v1006 = vpack.c.b16 %v448, %v1002
        %v1007 = vpack.c.b16 %v449, %v1003
        %v1008 = vpack.c.b16 %v1004, %v1004
        %v1009 = vpack.c.b16 %v1005, %v1005
        %vm1010 = vcmask 1044480
        %v1011 = vrot.slane %v1006, 3
        %v1012 = vrot.slane %v1008, 3
        %v1013 = vsel %vm1010, %v1011, %v1012
        %v1014 = vrot.slane %v1007, 3
        %v1015 = vrot.slane %v1009, 3
        %v1016 = vsel %vm1010, %v1014, %v1015
        %v1042 = vunpack.c.l.b16 %v976
        %v1043 = vunpack.c.l.b16 %v977
        %v1044 = vunpack.c.l.b16 %v978
        %v1045 = vunpack.c.l.b16 %v979
        %v1046 = vunpack.c.l.b16 %v980
        %v1047 = vunpack.c.l.b16 %v981
        %v1048 = vunpack.c.l.b16 %v982
        %v1049 = vunpack.c.l.b16 %v983
        %v1050 = vunpack.c.l.b16 %v984
        %v1051 = vunpack.c.l.b16 %v985
        %v1052 = vunpack.c.l.b16 %v986
        %v1053 = vunpack.c.l.b16 %v987
        %v1054 = vunpack.c.l.b16 %v988
        %v1055 = vunpack.c.l.b16 %v989
        %v1056 = vunpack.c.l.b16 %v990
        %v1057 = vunpack.c.l.b16 %v991
        %v1058 = vunpack.c.l.b16 %v992
        %v1059 = vunpack.c.l.b16 %v993
        %v1060 = vunpack.c.l.b16 %v994
        %v1061 = vunpack.c.l.b16 %v995
        %v1062 = vunpack.c.l.b16 %v996
        %v1063 = vunpack.c.l.b16 %v997
        %v1064 = vunpack.c.l.b16 %v998
        %v1065 = vunpack.c.l.b16 %v999
        %v1066 = vpack.c.b16 %v1043, %v1042
        %v1067 = vpack.c.b16 %v1045, %v1044
        %v1068 = vpack.c.b16 %v1047, %v1046
        %v1069 = vpack.c.b16 %v1049, %v1048
        %v1070 = vpack.c.b16 %v1051, %v1050
        %v1071 = vpack.c.b16 %v1053, %v1052
        %v1072 = vpack.c.b16 %v1055, %v1054
        %v1073 = vpack.c.b16 %v1057, %v1056
        %v1074 = vpack.c.b16 %v1059, %v1058
        %v1075 = vpack.c.b16 %v1061, %v1060
        %v1076 = vpack.c.b16 %v1063, %v1062
        %v1077 = vpack.c.b16 %v1065, %v1064
        %v1091 = vsel %vm704, %v1016, 0
        %1093 = vmatpush.bf16.msra.mxu0 %v1073
        %1094 = vmatpush.bf16.msra.mxu0 %v1072
        %1095 = vmatpush.bf16.msra.mxu0 %v1071
        %1096 = vmatpush.bf16.msra.mxu0 %v1070
        %1097 = vmatpush.bf16.msra.mxu0 %v1069
        %1098 = vmatpush.bf16.msra.mxu0 %v1068
        %1099 = vmatpush.bf16.msra.mxu0 %v1067
        %1100 = vmatpush.bf16.msra.mxu0 %v1066
        %1101 = vmatmul.bf16.gmra.mxu0 %v1013
        %v1102 = vpop.f32.mrf.mxu0
        %v1103 = vadd.f32 0.0, %v1102
        %v1104 = vpop.f32.mrf.mxu0
        %v1105 = vadd.f32 0.0, %v1104
        %1106 = vdwg.mxu0
        %1107 = vmatpush.bf16.msra.mxu0 0
        %1108 = vmatpush.bf16.msra.mxu0 0
        %1109 = vmatpush.bf16.msra.mxu0 0
        %1110 = vmatpush.bf16.msra.mxu0 0
        %1111 = vmatpush.bf16.msra.mxu0 %v1077
        %1112 = vmatpush.bf16.msra.mxu0 %v1076
        %1113 = vmatpush.bf16.msra.mxu0 %v1075
        %1114 = vmatpush.bf16.msra.mxu0 %v1074
        %1115 = vmatmul.bf16.gmra.mxu0 %v1091
        %v1116 = vpop.f32.mrf.mxu0
        %v1117 = vadd.f32 %v1103, %v1116
        %v1118 = vpop.f32.mrf.mxu0
        %v1119 = vadd.f32 %v1105, %v1118
        %1120 = vdwg.mxu0
        %v1121 = vadd.f32 %v971, %v1117
        %v1122 = vadd.f32 %v972, %v1119
        %v1123 = vmax.f32 %v1121, 0.0
        %v1124 = vmax.f32 %v1122, 0.0
        %v1125 = vpack.c.bf16 %v1123, %v1123
        %v1126 = vpack.c.bf16 %v1124, %v1124
        %v1127 = vld [vmem:[%s380] sm:$0xff]
        %s1128 = scalar_lea.vmem [#allocation5], 192
        %v1129 = vld [vmem:[%s1128] sm:$0xf]
        %v1130 = vld [vmem:[%s1128 + $0x4] sm:$0xf]
        %v1131 = vld [vmem:[%s1128 + $0x8] sm:$0xf]
        %v1132 = vld [vmem:[%s1128 + $0xc] sm:$0xf]
        %v1133 = vld [vmem:[%s1128 + $0x10] sm:$0xf]
        %v1134 = vld [vmem:[%s1128 + $0x14] sm:$0xf]
        %v1135 = vld [vmem:[%s1128 + $0x18] sm:$0xf]
        %v1136 = vld [vmem:[%s1128 + $0x1c] sm:$0xf]
        %v1137 = vld [vmem:[%s1128 + $0x20] sm:$0xf]
        %v1138 = vld [vmem:[%s1128 + $0x24] sm:$0xf]
        %v1139 = vld [vmem:[%s1128 + $0x28] sm:$0xf]
        %v1140 = vld [vmem:[%s1128 + $0x2c] sm:$0xf]
        %v1141 = vld [vmem:[%s1128 + $0x30] sm:$0xf]
        %v1142 = vld [vmem:[%s1128 + $0x34] sm:$0xf]
        %v1143 = vld [vmem:[%s1128 + $0x38] sm:$0xf]
        %v1144 = vld [vmem:[%s1128 + $0x3c] sm:$0xf]
        %v1145 = vld [vmem:[%s1128 + $0x40] sm:$0xf]
        %v1146 = vld [vmem:[%s1128 + $0x44] sm:$0xf]
        %v1147 = vld [vmem:[%s1128 + $0x48] sm:$0xf]
        %v1148 = vld [vmem:[%s1128 + $0x4c] sm:$0xf]
        %v1149 = vld [vmem:[%s1128 + $0x50] sm:$0xf]
        %v1150 = vld [vmem:[%s1128 + $0x54] sm:$0xf]
        %v1151 = vld [vmem:[%s1128 + $0x58] sm:$0xf]
        %v1152 = vld [vmem:[%s1128 + $0x5c] sm:$0xf]
        %v1154 = vunpack.c.l.b16 %v1127
        %v1155 = vunpack.c.h.b16 %v1127
        %v1156 = vpack.c.b16 %v448, %v1154
        %v1157 = vpack.c.b16 %v449, %v1155
        %vm1158 = vsmask.f32 7424
        %v1160 = vshrl.u32 %v1156, 16
        %v1162 = vshll.u32 %v1156, 16
        %v1164 = vrot.slane %v1162, 1
        %v1165 = vor.u32 %v1160, %v1164
        %v1167 = vshll.u32 %v858, 16
        %v1169 = vrot.slane %v1167, 1
        %v1170 = vsel %vm1158, %v1165, %v1169
        %v1172 = vshrl.u32 %v1157, 16
        %v1174 = vshll.u32 %v1157, 16
        %v1176 = vrot.slane %v1174, 1
        %v1177 = vor.u32 %v1172, %v1176
        %v1179 = vshll.u32 %v859, 16
        %v1181 = vrot.slane %v1179, 1
        %v1182 = vsel %vm1158, %v1177, %v1181
        %v1208 = vunpack.c.l.b16 %v1129
        %v1209 = vunpack.c.l.b16 %v1130
        %v1210 = vunpack.c.l.b16 %v1131
        %v1211 = vunpack.c.l.b16 %v1132
        %v1212 = vunpack.c.l.b16 %v1133
        %v1213 = vunpack.c.l.b16 %v1134
        %v1214 = vunpack.c.l.b16 %v1135
        %v1215 = vunpack.c.l.b16 %v1136
        %v1216 = vunpack.c.l.b16 %v1137
        %v1217 = vunpack.c.l.b16 %v1138
        %v1218 = vunpack.c.l.b16 %v1139
        %v1219 = vunpack.c.l.b16 %v1140
        %v1220 = vunpack.c.l.b16 %v1141
        %v1221 = vunpack.c.l.b16 %v1142
        %v1222 = vunpack.c.l.b16 %v1143
        %v1223 = vunpack.c.l.b16 %v1144
        %v1224 = vunpack.c.l.b16 %v1145
        %v1225 = vunpack.c.l.b16 %v1146
        %v1226 = vunpack.c.l.b16 %v1147
        %v1227 = vunpack.c.l.b16 %v1148
        %v1228 = vunpack.c.l.b16 %v1149
        %v1229 = vunpack.c.l.b16 %v1150
        %v1230 = vunpack.c.l.b16 %v1151
        %v1231 = vunpack.c.l.b16 %v1152
        %v1232 = vpack.c.b16 %v1209, %v1208
        %v1233 = vpack.c.b16 %v1211, %v1210
        %v1234 = vpack.c.b16 %v1213, %v1212
        %v1235 = vpack.c.b16 %v1215, %v1214
        %v1236 = vpack.c.b16 %v1217, %v1216
        %v1237 = vpack.c.b16 %v1219, %v1218
        %v1238 = vpack.c.b16 %v1221, %v1220
        %v1239 = vpack.c.b16 %v1223, %v1222
        %v1240 = vpack.c.b16 %v1225, %v1224
        %v1241 = vpack.c.b16 %v1227, %v1226
        %v1242 = vpack.c.b16 %v1229, %v1228
        %v1243 = vpack.c.b16 %v1231, %v1230
        %v1257 = vsel %vm704, %v1182, 0
        %1259 = vmatpush.bf16.msra.mxu0 %v1239
        %1260 = vmatpush.bf16.msra.mxu0 %v1238
        %1261 = vmatpush.bf16.msra.mxu0 %v1237
        %1262 = vmatpush.bf16.msra.mxu0 %v1236
        %1263 = vmatpush.bf16.msra.mxu0 %v1235
        %1264 = vmatpush.bf16.msra.mxu0 %v1234
        %1265 = vmatpush.bf16.msra.mxu0 %v1233
        %1266 = vmatpush.bf16.msra.mxu0 %v1232
        %1267 = vmatmul.bf16.gmra.mxu0 %v1170
        %v1268 = vpop.f32.mrf.mxu0
        %v1269 = vadd.f32 0.0, %v1268
        %v1270 = vpop.f32.mrf.mxu0
        %v1271 = vadd.f32 0.0, %v1270
        %1272 = vdwg.mxu0
        %1273 = vmatpush.bf16.msra.mxu0 0
        %1274 = vmatpush.bf16.msra.mxu0 0
        %1275 = vmatpush.bf16.msra.mxu0 0
        %1276 = vmatpush.bf16.msra.mxu0 0
        %1277 = vmatpush.bf16.msra.mxu0 %v1243
        %1278 = vmatpush.bf16.msra.mxu0 %v1242
        %1279 = vmatpush.bf16.msra.mxu0 %v1241
        %1280 = vmatpush.bf16.msra.mxu0 %v1240
        %1281 = vmatmul.bf16.gmra.mxu0 %v1257
        %v1282 = vpop.f32.mrf.mxu0
        %v1283 = vadd.f32 %v1269, %v1282
        %v1284 = vpop.f32.mrf.mxu0
        %v1285 = vadd.f32 %v1271, %v1284
        %1286 = vdwg.mxu0
        %v1287 = vadd.f32 %v788, %v1283
        %v1288 = vadd.f32 %v790, %v1285
        %v1289 = vld [vmem:[%s380 + $0x10] sm:$0xff]
        %s1290 = scalar_lea.vmem [#allocation5], 288
        %v1291 = vld [vmem:[%s1290] sm:$0xf]
        %v1292 = vld [vmem:[%s1290 + $0x4] sm:$0xf]
        %v1293 = vld [vmem:[%s1290 + $0x8] sm:$0xf]
        %v1294 = vld [vmem:[%s1290 + $0xc] sm:$0xf]
        %v1295 = vld [vmem:[%s1290 + $0x10] sm:$0xf]
        %v1296 = vld [vmem:[%s1290 + $0x14] sm:$0xf]
        %v1297 = vld [vmem:[%s1290 + $0x18] sm:$0xf]
        %v1298 = vld [vmem:[%s1290 + $0x1c] sm:$0xf]
        %v1299 = vld [vmem:[%s1290 + $0x20] sm:$0xf]
        %v1300 = vld [vmem:[%s1290 + $0x24] sm:$0xf]
        %v1301 = vld [vmem:[%s1290 + $0x28] sm:$0xf]
        %v1302 = vld [vmem:[%s1290 + $0x2c] sm:$0xf]
        %v1303 = vld [vmem:[%s1290 + $0x30] sm:$0xf]
        %v1304 = vld [vmem:[%s1290 + $0x34] sm:$0xf]
        %v1305 = vld [vmem:[%s1290 + $0x38] sm:$0xf]
        %v1306 = vld [vmem:[%s1290 + $0x3c] sm:$0xf]
        %v1307 = vld [vmem:[%s1290 + $0x40] sm:$0xf]
        %v1308 = vld [vmem:[%s1290 + $0x44] sm:$0xf]
        %v1309 = vld [vmem:[%s1290 + $0x48] sm:$0xf]
        %v1310 = vld [vmem:[%s1290 + $0x4c] sm:$0xf]
        %v1311 = vld [vmem:[%s1290 + $0x50] sm:$0xf]
        %v1312 = vld [vmem:[%s1290 + $0x54] sm:$0xf]
        %v1313 = vld [vmem:[%s1290 + $0x58] sm:$0xf]
        %v1314 = vld [vmem:[%s1290 + $0x5c] sm:$0xf]
        %v1316 = vunpack.c.l.b16 %v1289
        %v1317 = vunpack.c.h.b16 %v1289
        %v1318 = vpack.c.b16 %v1316, %v1316
        %v1319 = vpack.c.b16 %v1317, %v1317
        %vm1320 = vsmask.f32 4352
        %v1322 = vshrl.u32 %v1006, 16
        %v1324 = vrot.slane %v1322, 3
        %v1325 = vshll.u32 %v1006, 16
        %v1327 = vrot.slane %v1325, 4
        %v1328 = vor.u32 %v1324, %v1327
        %v1330 = vshrl.u32 %v1318, 16
        %v1332 = vrot.slane %v1330, 3
        %v1333 = vshll.u32 %v1318, 16
        %v1335 = vrot.slane %v1333, 4
        %v1336 = vor.u32 %v1332, %v1335
        %v1337 = vsel %vm1320, %v1328, %v1336
        %v1339 = vshrl.u32 %v1007, 16
        %v1341 = vrot.slane %v1339, 3
        %v1342 = vshll.u32 %v1007, 16
        %v1344 = vrot.slane %v1342, 4
        %v1345 = vor.u32 %v1341, %v1344
        %v1347 = vshrl.u32 %v1319, 16
        %v1349 = vrot.slane %v1347, 3
        %v1350 = vshll.u32 %v1319, 16
        %v1352 = vrot.slane %v1350, 4
        %v1353 = vor.u32 %v1349, %v1352
        %v1354 = vsel %vm1320, %v1345, %v1353
        %v1380 = vunpack.c.l.b16 %v1291
        %v1381 = vunpack.c.l.b16 %v1292
        %v1382 = vunpack.c.l.b16 %v1293
        %v1383 = vunpack.c.l.b16 %v1294
        %v1384 = vunpack.c.l.b16 %v1295
        %v1385 = vunpack.c.l.b16 %v1296
        %v1386 = vunpack.c.l.b16 %v1297
        %v1387 = vunpack.c.l.b16 %v1298
        %v1388 = vunpack.c.l.b16 %v1299
        %v1389 = vunpack.c.l.b16 %v1300
        %v1390 = vunpack.c.l.b16 %v1301
        %v1391 = vunpack.c.l.b16 %v1302
        %v1392 = vunpack.c.l.b16 %v1303
        %v1393 = vunpack.c.l.b16 %v1304
        %v1394 = vunpack.c.l.b16 %v1305
        %v1395 = vunpack.c.l.b16 %v1306
        %v1396 = vunpack.c.l.b16 %v1307
        %v1397 = vunpack.c.l.b16 %v1308
        %v1398 = vunpack.c.l.b16 %v1309
        %v1399 = vunpack.c.l.b16 %v1310
        %v1400 = vunpack.c.l.b16 %v1311
        %v1401 = vunpack.c.l.b16 %v1312
        %v1402 = vunpack.c.l.b16 %v1313
        %v1403 = vunpack.c.l.b16 %v1314
        %v1404 = vpack.c.b16 %v1381, %v1380
        %v1405 = vpack.c.b16 %v1383, %v1382
        %v1406 = vpack.c.b16 %v1385, %v1384
        %v1407 = vpack.c.b16 %v1387, %v1386
        %v1408 = vpack.c.b16 %v1389, %v1388
        %v1409 = vpack.c.b16 %v1391, %v1390
        %v1410 = vpack.c.b16 %v1393, %v1392
        %v1411 = vpack.c.b16 %v1395, %v1394
        %v1412 = vpack.c.b16 %v1397, %v1396
        %v1413 = vpack.c.b16 %v1399, %v1398
        %v1414 = vpack.c.b16 %v1401, %v1400
        %v1415 = vpack.c.b16 %v1403, %v1402
        %v1429 = vsel %vm704, %v1354, 0
        %1431 = vmatpush.bf16.msra.mxu0 %v1411
        %1432 = vmatpush.bf16.msra.mxu0 %v1410
        %1433 = vmatpush.bf16.msra.mxu0 %v1409
        %1434 = vmatpush.bf16.msra.mxu0 %v1408
        %1435 = vmatpush.bf16.msra.mxu0 %v1407
        %1436 = vmatpush.bf16.msra.mxu0 %v1406
        %1437 = vmatpush.bf16.msra.mxu0 %v1405
        %1438 = vmatpush.bf16.msra.mxu0 %v1404
        %1439 = vmatmul.bf16.gmra.mxu0 %v1337
        %v1440 = vpop.f32.mrf.mxu0
        %v1441 = vadd.f32 0.0, %v1440
        %v1442 = vpop.f32.mrf.mxu0
        %v1443 = vadd.f32 0.0, %v1442
        %1444 = vdwg.mxu0
        %1445 = vmatpush.bf16.msra.mxu0 0
        %1446 = vmatpush.bf16.msra.mxu0 0
        %1447 = vmatpush.bf16.msra.mxu0 0
        %1448 = vmatpush.bf16.msra.mxu0 0
        %1449 = vmatpush.bf16.msra.mxu0 %v1415
        %1450 = vmatpush.bf16.msra.mxu0 %v1414
        %1451 = vmatpush.bf16.msra.mxu0 %v1413
        %1452 = vmatpush.bf16.msra.mxu0 %v1412
        %1453 = vmatmul.bf16.gmra.mxu0 %v1429
        %v1454 = vpop.f32.mrf.mxu0
        %v1455 = vadd.f32 %v1441, %v1454
        %v1456 = vpop.f32.mrf.mxu0
        %v1457 = vadd.f32 %v1443, %v1456
        %1458 = vdwg.mxu0
        %v1459 = vadd.f32 %v1287, %v1455
        %v1460 = vadd.f32 %v1288, %v1457
        %v1461 = vmax.f32 %v1459, 0.0
        %v1462 = vmax.f32 %v1460, 0.0
        %v1463 = vpack.c.bf16 %v1461, %v1461
        %v1464 = vpack.c.bf16 %v1462, %v1462
        %v1465 = vld [vmem:[%s380] sm:$0xff]
        %v1466 = vld [vmem:[%s380 + $0x8] sm:$0xff]
        %s1467 = scalar_lea.vmem [#allocation5], 384
        %v1468 = vld [vmem:[%s1467] sm:$0xf]
        %v1469 = vld [vmem:[%s1467 + $0x4] sm:$0xf]
        %v1470 = vld [vmem:[%s1467 + $0x8] sm:$0xf]
        %v1471 = vld [vmem:[%s1467 + $0xc] sm:$0xf]
        %v1472 = vld [vmem:[%s1467 + $0x10] sm:$0xf]
        %v1473 = vld [vmem:[%s1467 + $0x14] sm:$0xf]
        %v1474 = vld [vmem:[%s1467 + $0x18] sm:$0xf]
        %v1475 = vld [vmem:[%s1467 + $0x1c] sm:$0xf]
        %v1476 = vld [vmem:[%s1467 + $0x20] sm:$0xf]
        %v1477 = vld [vmem:[%s1467 + $0x24] sm:$0xf]
        %v1478 = vld [vmem:[%s1467 + $0x28] sm:$0xf]
        %v1479 = vld [vmem:[%s1467 + $0x2c] sm:$0xf]
        %v1480 = vld [vmem:[%s1467 + $0x30] sm:$0xf]
        %v1481 = vld [vmem:[%s1467 + $0x34] sm:$0xf]
        %v1482 = vld [vmem:[%s1467 + $0x38] sm:$0xf]
        %v1483 = vld [vmem:[%s1467 + $0x3c] sm:$0xf]
        %v1484 = vld [vmem:[%s1467 + $0x40] sm:$0xf]
        %v1485 = vld [vmem:[%s1467 + $0x44] sm:$0xf]
        %v1486 = vld [vmem:[%s1467 + $0x48] sm:$0xf]
        %v1487 = vld [vmem:[%s1467 + $0x4c] sm:$0xf]
        %v1488 = vld [vmem:[%s1467 + $0x50] sm:$0xf]
        %v1489 = vld [vmem:[%s1467 + $0x54] sm:$0xf]
        %v1490 = vld [vmem:[%s1467 + $0x58] sm:$0xf]
        %v1491 = vld [vmem:[%s1467 + $0x5c] sm:$0xf]
        %v1494 = vunpack.c.l.b16 %v1465
        %v1495 = vunpack.c.h.b16 %v1465
        %v1496 = vunpack.c.l.b16 %v1466
        %v1497 = vunpack.c.h.b16 %v1466
        %v1498 = vpack.c.b16 %v1496, %v1494
        %v1499 = vpack.c.b16 %v1497, %v1495
        %v1525 = vunpack.c.l.b16 %v1468
        %v1526 = vunpack.c.l.b16 %v1469
        %v1527 = vunpack.c.l.b16 %v1470
        %v1528 = vunpack.c.l.b16 %v1471
        %v1529 = vunpack.c.l.b16 %v1472
        %v1530 = vunpack.c.l.b16 %v1473
        %v1531 = vunpack.c.l.b16 %v1474
        %v1532 = vunpack.c.l.b16 %v1475
        %v1533 = vunpack.c.l.b16 %v1476
        %v1534 = vunpack.c.l.b16 %v1477
        %v1535 = vunpack.c.l.b16 %v1478
        %v1536 = vunpack.c.l.b16 %v1479
        %v1537 = vunpack.c.l.b16 %v1480
        %v1538 = vunpack.c.l.b16 %v1481
        %v1539 = vunpack.c.l.b16 %v1482
        %v1540 = vunpack.c.l.b16 %v1483
        %v1541 = vunpack.c.l.b16 %v1484
        %v1542 = vunpack.c.l.b16 %v1485
        %v1543 = vunpack.c.l.b16 %v1486
        %v1544 = vunpack.c.l.b16 %v1487
        %v1545 = vunpack.c.l.b16 %v1488
        %v1546 = vunpack.c.l.b16 %v1489
        %v1547 = vunpack.c.l.b16 %v1490
        %v1548 = vunpack.c.l.b16 %v1491
        %v1549 = vpack.c.b16 %v1526, %v1525
        %v1550 = vpack.c.b16 %v1528, %v1527
        %v1551 = vpack.c.b16 %v1530, %v1529
        %v1552 = vpack.c.b16 %v1532, %v1531
        %v1553 = vpack.c.b16 %v1534, %v1533
        %v1554 = vpack.c.b16 %v1536, %v1535
        %v1555 = vpack.c.b16 %v1538, %v1537
        %v1556 = vpack.c.b16 %v1540, %v1539
        %v1557 = vpack.c.b16 %v1542, %v1541
        %v1558 = vpack.c.b16 %v1544, %v1543
        %v1559 = vpack.c.b16 %v1546, %v1545
        %v1560 = vpack.c.b16 %v1548, %v1547
        %v1574 = vsel %vm704, %v1499, 0
        %1576 = vmatpush.bf16.msra.mxu0 %v1556
        %1577 = vmatpush.bf16.msra.mxu0 %v1555
        %1578 = vmatpush.bf16.msra.mxu0 %v1554
        %1579 = vmatpush.bf16.msra.mxu0 %v1553
        %1580 = vmatpush.bf16.msra.mxu0 %v1552
        %1581 = vmatpush.bf16.msra.mxu0 %v1551
        %1582 = vmatpush.bf16.msra.mxu0 %v1550
        %1583 = vmatpush.bf16.msra.mxu0 %v1549
        %1584 = vmatmul.bf16.gmra.mxu0 %v1498
        %v1585 = vpop.f32.mrf.mxu0
        %v1586 = vadd.f32 0.0, %v1585
        %v1587 = vpop.f32.mrf.mxu0
        %v1588 = vadd.f32 0.0, %v1587
        %1589 = vdwg.mxu0
        %1590 = vmatpush.bf16.msra.mxu0 0
        %1591 = vmatpush.bf16.msra.mxu0 0
        %1592 = vmatpush.bf16.msra.mxu0 0
        %1593 = vmatpush.bf16.msra.mxu0 0
        %1594 = vmatpush.bf16.msra.mxu0 %v1560
        %1595 = vmatpush.bf16.msra.mxu0 %v1559
        %1596 = vmatpush.bf16.msra.mxu0 %v1558
        %1597 = vmatpush.bf16.msra.mxu0 %v1557
        %1598 = vmatmul.bf16.gmra.mxu0 %v1574
        %v1599 = vpop.f32.mrf.mxu0
        %v1600 = vadd.f32 %v1586, %v1599
        %v1601 = vpop.f32.mrf.mxu0
        %v1602 = vadd.f32 %v1588, %v1601
        %1603 = vdwg.mxu0
        %v1604 = vadd.f32 %v816, %v1600
        %v1605 = vadd.f32 %v818, %v1602
        %s1606 = scalar_lea.vmem [#allocation5], 480
        %v1607 = vld [vmem:[%s1606] sm:$0xf]
        %v1608 = vld [vmem:[%s1606 + $0x4] sm:$0xf]
        %v1609 = vld [vmem:[%s1606 + $0x8] sm:$0xf]
        %v1610 = vld [vmem:[%s1606 + $0xc] sm:$0xf]
        %v1611 = vld [vmem:[%s1606 + $0x10] sm:$0xf]
        %v1612 = vld [vmem:[%s1606 + $0x14] sm:$0xf]
        %v1613 = vld [vmem:[%s1606 + $0x18] sm:$0xf]
        %v1614 = vld [vmem:[%s1606 + $0x1c] sm:$0xf]
        %v1615 = vld [vmem:[%s1606 + $0x20] sm:$0xf]
        %v1616 = vld [vmem:[%s1606 + $0x24] sm:$0xf]
        %v1617 = vld [vmem:[%s1606 + $0x28] sm:$0xf]
        %v1618 = vld [vmem:[%s1606 + $0x2c] sm:$0xf]
        %v1619 = vld [vmem:[%s1606 + $0x30] sm:$0xf]
        %v1620 = vld [vmem:[%s1606 + $0x34] sm:$0xf]
        %v1621 = vld [vmem:[%s1606 + $0x38] sm:$0xf]
        %v1622 = vld [vmem:[%s1606 + $0x3c] sm:$0xf]
        %v1623 = vld [vmem:[%s1606 + $0x40] sm:$0xf]
        %v1624 = vld [vmem:[%s1606 + $0x44] sm:$0xf]
        %v1625 = vld [vmem:[%s1606 + $0x48] sm:$0xf]
        %v1626 = vld [vmem:[%s1606 + $0x4c] sm:$0xf]
        %v1627 = vld [vmem:[%s1606 + $0x50] sm:$0xf]
        %v1628 = vld [vmem:[%s1606 + $0x54] sm:$0xf]
        %v1629 = vld [vmem:[%s1606 + $0x58] sm:$0xf]
        %v1630 = vld [vmem:[%s1606 + $0x5c] sm:$0xf]
        %v1631 = vpack.c.b16 %v1316, %v448
        %v1632 = vpack.c.b16 %v1317, %v449
        %v1658 = vunpack.c.l.b16 %v1607
        %v1659 = vunpack.c.l.b16 %v1608
        %v1660 = vunpack.c.l.b16 %v1609
        %v1661 = vunpack.c.l.b16 %v1610
        %v1662 = vunpack.c.l.b16 %v1611
        %v1663 = vunpack.c.l.b16 %v1612
        %v1664 = vunpack.c.l.b16 %v1613
        %v1665 = vunpack.c.l.b16 %v1614
        %v1666 = vunpack.c.l.b16 %v1615
        %v1667 = vunpack.c.l.b16 %v1616
        %v1668 = vunpack.c.l.b16 %v1617
        %v1669 = vunpack.c.l.b16 %v1618
        %v1670 = vunpack.c.l.b16 %v1619
        %v1671 = vunpack.c.l.b16 %v1620
        %v1672 = vunpack.c.l.b16 %v1621
        %v1673 = vunpack.c.l.b16 %v1622
        %v1674 = vunpack.c.l.b16 %v1623
        %v1675 = vunpack.c.l.b16 %v1624
        %v1676 = vunpack.c.l.b16 %v1625
        %v1677 = vunpack.c.l.b16 %v1626
        %v1678 = vunpack.c.l.b16 %v1627
        %v1679 = vunpack.c.l.b16 %v1628
        %v1680 = vunpack.c.l.b16 %v1629
        %v1681 = vunpack.c.l.b16 %v1630
        %v1682 = vpack.c.b16 %v1659, %v1658
        %v1683 = vpack.c.b16 %v1661, %v1660
        %v1684 = vpack.c.b16 %v1663, %v1662
        %v1685 = vpack.c.b16 %v1665, %v1664
        %v1686 = vpack.c.b16 %v1667, %v1666
        %v1687 = vpack.c.b16 %v1669, %v1668
        %v1688 = vpack.c.b16 %v1671, %v1670
        %v1689 = vpack.c.b16 %v1673, %v1672
        %v1690 = vpack.c.b16 %v1675, %v1674
        %v1691 = vpack.c.b16 %v1677, %v1676
        %v1692 = vpack.c.b16 %v1679, %v1678
        %v1693 = vpack.c.b16 %v1681, %v1680
        %v1707 = vsel %vm704, %v1632, 0
        %1709 = vmatpush.bf16.msra.mxu0 %v1689
        %1710 = vmatpush.bf16.msra.mxu0 %v1688
        %1711 = vmatpush.bf16.msra.mxu0 %v1687
        %1712 = vmatpush.bf16.msra.mxu0 %v1686
        %1713 = vmatpush.bf16.msra.mxu0 %v1685
        %1714 = vmatpush.bf16.msra.mxu0 %v1684
        %1715 = vmatpush.bf16.msra.mxu0 %v1683
        %1716 = vmatpush.bf16.msra.mxu0 %v1682
        %1717 = vmatmul.bf16.gmra.mxu0 %v1631
        %v1718 = vpop.f32.mrf.mxu0
        %v1719 = vadd.f32 0.0, %v1718
        %v1720 = vpop.f32.mrf.mxu0
        %v1721 = vadd.f32 0.0, %v1720
        %1722 = vdwg.mxu0
        %1723 = vmatpush.bf16.msra.mxu0 0
        %1724 = vmatpush.bf16.msra.mxu0 0
        %1725 = vmatpush.bf16.msra.mxu0 0
        %1726 = vmatpush.bf16.msra.mxu0 0
        %1727 = vmatpush.bf16.msra.mxu0 %v1693
        %1728 = vmatpush.bf16.msra.mxu0 %v1692
        %1729 = vmatpush.bf16.msra.mxu0 %v1691
        %1730 = vmatpush.bf16.msra.mxu0 %v1690
        %1731 = vmatmul.bf16.gmra.mxu0 %v1707
        %v1732 = vpop.f32.mrf.mxu0
        %v1733 = vadd.f32 %v1719, %v1732
        %v1734 = vpop.f32.mrf.mxu0
        %v1735 = vadd.f32 %v1721, %v1734
        %1736 = vdwg.mxu0
        %v1737 = vadd.f32 %v1604, %v1733
        %v1738 = vadd.f32 %v1605, %v1735
        %v1739 = vmax.f32 %v1737, 0.0
        %v1740 = vmax.f32 %v1738, 0.0
        %v1741 = vpack.c.bf16 %v1739, %v1739
        %v1742 = vpack.c.bf16 %v1740, %v1740
        %v1745 = vunpack.c.l.b16 %v822
        %v1746 = vunpack.c.l.b16 %v823
        %v1747 = vpack.c.b16 %v1746, %v1745
        %v1751 = vunpack.c.l.b16 %v1125
        %v1752 = vunpack.c.l.b16 %v1126
        %v1753 = vpack.c.b16 %v1752, %v1751
        %v1757 = vunpack.c.l.b16 %v1463
        %v1758 = vunpack.c.l.b16 %v1464
        %v1759 = vpack.c.b16 %v1758, %v1757
        %v1763 = vunpack.c.l.b16 %v1741
        %v1764 = vunpack.c.l.b16 %v1742
        %v1765 = vpack.c.b16 %v1764, %v1763
        %v1767 = vld [vmem:[#allocation7] sm:$0xf]
        %v1768 = vld [vmem:[#allocation7 + $0x4] sm:$0xf]
        %v1769 = vld [vmem:[#allocation7 + $0x8] sm:$0xf]
        %v1770 = vld [vmem:[#allocation7 + $0xc] sm:$0xf]
        %v1771 = vld [vmem:[#allocation7 + $0x10] sm:$0xf]
        %v1772 = vld [vmem:[#allocation7 + $0x14] sm:$0xf]
        %v1773 = vld [vmem:[#allocation7 + $0x18] sm:$0xf]
        %v1774 = vld [vmem:[#allocation7 + $0x1c] sm:$0xf]
        %v1775 = vld [vmem:[#allocation7 + $0x20] sm:$0xf]
        %v1776 = vld [vmem:[#allocation7 + $0x24] sm:$0xf]
        %v1777 = vld [vmem:[#allocation7 + $0x28] sm:$0xf]
        %v1778 = vld [vmem:[#allocation7 + $0x2c] sm:$0xf]
        %v1779 = vld [vmem:[#allocation7 + $0x30] sm:$0xf]
        %v1780 = vld [vmem:[#allocation7 + $0x34] sm:$0xf]
        %v1781 = vld [vmem:[#allocation7 + $0x38] sm:$0xf]
        %v1782 = vld [vmem:[#allocation7 + $0x3c] sm:$0xf]
        %v1783 = vld [vmem:[#allocation7 + $0x40] sm:$0xf]
        %v1784 = vld [vmem:[#allocation7 + $0x44] sm:$0xf]
        %v1785 = vld [vmem:[#allocation7 + $0x48] sm:$0xf]
        %v1786 = vld [vmem:[#allocation7 + $0x4c] sm:$0xf]
        %v1787 = vld [vmem:[#allocation7 + $0x50] sm:$0xf]
        %v1788 = vld [vmem:[#allocation7 + $0x54] sm:$0xf]
        %v1789 = vld [vmem:[#allocation7 + $0x58] sm:$0xf]
        %v1790 = vld [vmem:[#allocation7 + $0x5c] sm:$0xf]
        %v1791 = vld [vmem:[#allocation7 + $0x60] sm:$0xf]
        %v1792 = vld [vmem:[#allocation7 + $0x64] sm:$0xf]
        %v1793 = vld [vmem:[#allocation7 + $0x68] sm:$0xf]
        %v1794 = vld [vmem:[#allocation7 + $0x6c] sm:$0xf]
        %v1795 = vld [vmem:[#allocation7 + $0x70] sm:$0xf]
        %v1796 = vld [vmem:[#allocation7 + $0x74] sm:$0xf]
        %v1797 = vld [vmem:[#allocation7 + $0x78] sm:$0xf]
        %v1798 = vld [vmem:[#allocation7 + $0x7c] sm:$0xf]
        %v1799 = vld [vmem:[#allocation7 + $0x80] sm:$0xf]
        %v1800 = vld [vmem:[#allocation7 + $0x84] sm:$0xf]
        %v1801 = vld [vmem:[#allocation7 + $0x88] sm:$0xf]
        %v1802 = vld [vmem:[#allocation7 + $0x8c] sm:$0xf]
        %v1803 = vld [vmem:[#allocation7 + $0x90] sm:$0xf]
        %v1804 = vld [vmem:[#allocation7 + $0x94] sm:$0xf]
        %v1805 = vld [vmem:[#allocation7 + $0x98] sm:$0xf]
        %v1806 = vld [vmem:[#allocation7 + $0x9c] sm:$0xf]
        %v1807 = vld [vmem:[#allocation7 + $0xa0] sm:$0xf]
        %v1808 = vld [vmem:[#allocation7 + $0xa4] sm:$0xf]
        %v1809 = vld [vmem:[#allocation7 + $0xa8] sm:$0xf]
        %v1810 = vld [vmem:[#allocation7 + $0xac] sm:$0xf]
        %v1811 = vld [vmem:[#allocation7 + $0xb0] sm:$0xf]
        %v1812 = vld [vmem:[#allocation7 + $0xb4] sm:$0xf]
        %v1813 = vld [vmem:[#allocation7 + $0xb8] sm:$0xf]
        %v1814 = vld [vmem:[#allocation7 + $0xbc] sm:$0xf]
        %v1815 = vld [vmem:[#allocation7 + $0xc0] sm:$0xf]
        %v1816 = vld [vmem:[#allocation7 + $0xc4] sm:$0xf]
        %v1817 = vld [vmem:[#allocation7 + $0xc8] sm:$0xf]
        %v1818 = vld [vmem:[#allocation7 + $0xcc] sm:$0xf]
        %v1819 = vld [vmem:[#allocation7 + $0xd0] sm:$0xf]
        %v1820 = vld [vmem:[#allocation7 + $0xd4] sm:$0xf]
        %v1821 = vld [vmem:[#allocation7 + $0xd8] sm:$0xf]
        %v1822 = vld [vmem:[#allocation7 + $0xdc] sm:$0xf]
        %v1823 = vld [vmem:[#allocation7 + $0xe0] sm:$0xf]
        %v1824 = vld [vmem:[#allocation7 + $0xe4] sm:$0xf]
        %v1825 = vld [vmem:[#allocation7 + $0xe8] sm:$0xf]
        %v1826 = vld [vmem:[#allocation7 + $0xec] sm:$0xf]
        %v1827 = vld [vmem:[#allocation7 + $0xf0] sm:$0xf]
        %v1828 = vld [vmem:[#allocation7 + $0xf4] sm:$0xf]
        %v1829 = vld [vmem:[#allocation7 + $0xf8] sm:$0xf]
        %v1830 = vld [vmem:[#allocation7 + $0xfc] sm:$0xf]
        %v1831 = vunpack.c.l.bf16 %v382
        %v1832 = vunpack.c.h.bf16 %v382
        %v1833 = vunpack.c.l.bf16 %v383
        %v1834 = vunpack.c.h.bf16 %v383
        %v1835 = vunpack.c.l.bf16 %v384
        %v1836 = vunpack.c.h.bf16 %v384
        %vm1843 = vcmask 1043456
        %v1844 = vrot.slane %v1831, 4
        %v1845 = vrot.slane %v1833, 4
        %v1846 = vsel %vm1843, %v1844, %v1845
        %v1847 = vrot.slane %v1832, 4
        %v1848 = vrot.slane %v1834, 4
        %v1849 = vsel %vm1843, %v1847, %v1848
        %v1850 = vrot.slane %v1835, 4
        %v1851 = vsel %vm1843, %v1845, %v1850
        %v1852 = vrot.slane %v1836, 4
        %v1853 = vsel %vm1843, %v1848, %v1852
        %v1858 = vadd.f32 %v1846, %v1851
        %v1859 = vrot.slane %v1858, 4
        %v1860 = vadd.f32 %v1858, %v1859
        %v1861 = vrot.slane %v1860, 2
        %v1862 = vadd.f32 %v1860, %v1861
        %v1863 = vrot.slane %v1862, 1
        %v1864 = vadd.f32 %v1862, %v1863
        %v1865 = vsel %vm704, %v1849, 0.0
        %v1866 = vsel %vm704, %v1853, 0.0
        %v1867 = vadd.f32 %v1865, %v1866
        %v1868 = vrot.slane %v1867, 4
        %v1869 = vadd.f32 %v1867, %v1868
        %v1870 = vrot.slane %v1869, 2
        %v1871 = vadd.f32 %v1869, %v1870
        %v1872 = vrot.slane %v1871, 1
        %v1873 = vadd.f32 %v1871, %v1872
        %v1874 = vld [vmem:[%s5] sm:$0xff]
        %v1875 = vld [vmem:[%s5 + $0x8] sm:$0xff]
        %v1876 = vld [vmem:[%s5 + $0x10] sm:$0xff]
        %v1877 = vld [vmem:[%s5 + $0x18] sm:$0xff]
        %v1878 = vld [vmem:[%s5 + $0x20] sm:$0xff]
        %v1879 = vld [vmem:[%s5 + $0x28] sm:$0xff]
        %v1880 = vld [vmem:[%s5 + $0x30] sm:$0xff]
        %v1881 = vld [vmem:[%s5 + $0x38] sm:$0xff]
        %v1882 = vld [vmem:[%s5 + $0x40] sm:$0xff]
        %v1883 = vld [vmem:[%s5 + $0x48] sm:$0xff]
        %v1884 = vld [vmem:[%s5 + $0x50] sm:$0xff]
        %v1885 = vld [vmem:[%s5 + $0x58] sm:$0xff]
        %v1886 = vld [vmem:[%s5 + $0x60] sm:$0xff]
        %v1887 = vld [vmem:[%s5 + $0x68] sm:$0xff]
        %v1888 = vld [vmem:[%s5 + $0x70] sm:$0xff]
        %v1889 = vld [vmem:[%s5 + $0x78] sm:$0xff]
        %v1890 = vld [vmem:[%s5 + $0x80] sm:$0xff]
        %v1891 = vld [vmem:[%s5 + $0x88] sm:$0xff]
        %v1892 = vld [vmem:[%s5 + $0x90] sm:$0xff]
        %v1893 = vld [vmem:[%s5 + $0x98] sm:$0xff]
        %v1894 = vld [vmem:[%s5 + $0xa0] sm:$0xff]
        %v1895 = vld [vmem:[%s5 + $0xa8] sm:$0xff]
        %v1896 = vld [vmem:[%s5 + $0xb0] sm:$0xff]
        %v1897 = vld [vmem:[%s5 + $0xb8] sm:$0xff]
        %v1898 = vld [vmem:[%s6] sm:$0x1]
        %v1900 = vsel %vm704, %v1873, 0
        %1902 = vmatpush.msra.mxu0 %v1889
        %1903 = vmatpush.msra.mxu0 %v1888
        %1904 = vmatpush.msra.mxu0 %v1887
        %1905 = vmatpush.msra.mxu0 %v1886
        %1906 = vmatpush.msra.mxu0 %v1885
        %1907 = vmatpush.msra.mxu0 %v1884
        %1908 = vmatpush.msra.mxu0 %v1883
        %1909 = vmatpush.msra.mxu0 %v1882
        %1910 = vmatpush.msra.mxu0 %v1881
        %1911 = vmatpush.msra.mxu0 %v1880
        %1912 = vmatpush.msra.mxu0 %v1879
        %1913 = vmatpush.msra.mxu0 %v1878
        %1914 = vmatpush.msra.mxu0 %v1877
        %1915 = vmatpush.msra.mxu0 %v1876
        %1916 = vmatpush.msra.mxu0 %v1875
        %1917 = vmatpush.msra.mxu0 %v1874
        %1918 = vmatmul.f32.gmra.mxu0 %v1864
        %v1919 = vpop.f32.mrf.mxu0
        %v1920 = vadd.f32 %v1898, %v1919
        %1921 = vdwg.mxu0
        %1922 = vmatpush.msra.mxu0 0.0
        %1923 = vmatpush.msra.mxu0 0.0
        %1924 = vmatpush.msra.mxu0 0.0
        %1925 = vmatpush.msra.mxu0 0.0
        %1926 = vmatpush.msra.mxu0 0.0
        %1927 = vmatpush.msra.mxu0 0.0
        %1928 = vmatpush.msra.mxu0 0.0
        %1929 = vmatpush.msra.mxu0 0.0
        %1930 = vmatpush.msra.mxu0 %v1897
        %1931 = vmatpush.msra.mxu0 %v1896
        %1932 = vmatpush.msra.mxu0 %v1895
        %1933 = vmatpush.msra.mxu0 %v1894
        %1934 = vmatpush.msra.mxu0 %v1893
        %1935 = vmatpush.msra.mxu0 %v1892
        %1936 = vmatpush.msra.mxu0 %v1891
        %1937 = vmatpush.msra.mxu0 %v1890
        %1938 = vmatmul.f32.gmra.mxu0 %v1900
        %v1939 = vpop.f32.mrf.mxu0
        %v1940 = vadd.f32 %v1920, %v1939
        %1941 = vdwg.mxu0
        %v1942 = vmax.f32 %v1940, 0.0
        %v1943 = vld [vmem:[%s7] sm:$0xff]
        %v1944 = vld [vmem:[%s8] sm:$0x1]
        %vm1945 = vcmask 64512
        %v1947 = vsel %vm1945, %v1942, 0
        %1949 = vmatpush.msra.mxu0 0.0
        %1950 = vmatpush.msra.mxu0 0.0
        %1951 = vmatpush.msra.mxu0 0.0
        %1952 = vmatpush.msra.mxu0 0.0
        %1953 = vmatpush.msra.mxu0 0.0
        %1954 = vmatpush.msra.mxu0 0.0
        %1955 = vmatpush.msra.mxu0 0.0
        %1956 = vmatpush.msra.mxu0 0.0
        %1957 = vmatpush.msra.mxu0 0.0
        %1958 = vmatpush.msra.mxu0 0.0
        %1959 = vmatpush.msra.mxu0 0.0
        %1960 = vmatpush.msra.mxu0 0.0
        %1961 = vmatpush.msra.mxu0 0.0
        %1962 = vmatpush.msra.mxu0 0.0
        %1963 = vmatpush.msra.mxu0 0.0
        %1964 = vmatpush.msra.mxu0 %v1943
        %1965 = vmatmul.f32.gmra.mxu0 %v1947
        %v1966 = vpop.f32.mrf.mxu0
        %v1967 = vadd.f32 %v1944, %v1966
        %1968 = vdwg.mxu0
        %v1969 = vperm.slane %v1967, 0
        %v2034 = vunpack.c.l.b16 %v1767
        %v2035 = vunpack.c.l.b16 %v1768
        %v2036 = vunpack.c.l.b16 %v1769
        %v2037 = vunpack.c.l.b16 %v1770
        %v2038 = vunpack.c.l.b16 %v1771
        %v2039 = vunpack.c.l.b16 %v1772
        %v2040 = vunpack.c.l.b16 %v1773
        %v2041 = vunpack.c.l.b16 %v1774
        %v2042 = vunpack.c.l.b16 %v1775
        %v2043 = vunpack.c.l.b16 %v1776
        %v2044 = vunpack.c.l.b16 %v1777
        %v2045 = vunpack.c.l.b16 %v1778
        %v2046 = vunpack.c.l.b16 %v1779
        %v2047 = vunpack.c.l.b16 %v1780
        %v2048 = vunpack.c.l.b16 %v1781
        %v2049 = vunpack.c.l.b16 %v1782
        %v2050 = vunpack.c.l.b16 %v1783
        %v2051 = vunpack.c.l.b16 %v1784
        %v2052 = vunpack.c.l.b16 %v1785
        %v2053 = vunpack.c.l.b16 %v1786
        %v2054 = vunpack.c.l.b16 %v1787
        %v2055 = vunpack.c.l.b16 %v1788
        %v2056 = vunpack.c.l.b16 %v1789
        %v2057 = vunpack.c.l.b16 %v1790
        %v2058 = vunpack.c.l.b16 %v1791
        %v2059 = vunpack.c.l.b16 %v1792
        %v2060 = vunpack.c.l.b16 %v1793
        %v2061 = vunpack.c.l.b16 %v1794
        %v2062 = vunpack.c.l.b16 %v1795
        %v2063 = vunpack.c.l.b16 %v1796
        %v2064 = vunpack.c.l.b16 %v1797
        %v2065 = vunpack.c.l.b16 %v1798
        %v2066 = vunpack.c.l.b16 %v1799
        %v2067 = vunpack.c.l.b16 %v1800
        %v2068 = vunpack.c.l.b16 %v1801
        %v2069 = vunpack.c.l.b16 %v1802
        %v2070 = vunpack.c.l.b16 %v1803
        %v2071 = vunpack.c.l.b16 %v1804
        %v2072 = vunpack.c.l.b16 %v1805
        %v2073 = vunpack.c.l.b16 %v1806
        %v2074 = vunpack.c.l.b16 %v1807
        %v2075 = vunpack.c.l.b16 %v1808
        %v2076 = vunpack.c.l.b16 %v1809
        %v2077 = vunpack.c.l.b16 %v1810
        %v2078 = vunpack.c.l.b16 %v1811
        %v2079 = vunpack.c.l.b16 %v1812
        %v2080 = vunpack.c.l.b16 %v1813
        %v2081 = vunpack.c.l.b16 %v1814
        %v2082 = vunpack.c.l.b16 %v1815
        %v2083 = vunpack.c.l.b16 %v1816
        %v2084 = vunpack.c.l.b16 %v1817
        %v2085 = vunpack.c.l.b16 %v1818
        %v2086 = vunpack.c.l.b16 %v1819
        %v2087 = vunpack.c.l.b16 %v1820
        %v2088 = vunpack.c.l.b16 %v1821
        %v2089 = vunpack.c.l.b16 %v1822
        %v2090 = vunpack.c.l.b16 %v1823
        %v2091 = vunpack.c.l.b16 %v1824
        %v2092 = vunpack.c.l.b16 %v1825
        %v2093 = vunpack.c.l.b16 %v1826
        %v2094 = vunpack.c.l.b16 %v1827
        %v2095 = vunpack.c.l.b16 %v1828
        %v2096 = vunpack.c.l.b16 %v1829
        %v2097 = vunpack.c.l.b16 %v1830
        %v2098 = vpack.c.b16 %v2035, %v2034
        %v2099 = vpack.c.b16 %v2037, %v2036
        %v2100 = vpack.c.b16 %v2039, %v2038
        %v2101 = vpack.c.b16 %v2041, %v2040
        %v2102 = vpack.c.b16 %v2043, %v2042
        %v2103 = vpack.c.b16 %v2045, %v2044
        %v2104 = vpack.c.b16 %v2047, %v2046
        %v2105 = vpack.c.b16 %v2049, %v2048
        %v2106 = vpack.c.b16 %v2051, %v2050
        %v2107 = vpack.c.b16 %v2053, %v2052
        %v2108 = vpack.c.b16 %v2055, %v2054
        %v2109 = vpack.c.b16 %v2057, %v2056
        %v2110 = vpack.c.b16 %v2059, %v2058
        %v2111 = vpack.c.b16 %v2061, %v2060
        %v2112 = vpack.c.b16 %v2063, %v2062
        %v2113 = vpack.c.b16 %v2065, %v2064
        %v2114 = vpack.c.b16 %v2067, %v2066
        %v2115 = vpack.c.b16 %v2069, %v2068
        %v2116 = vpack.c.b16 %v2071, %v2070
        %v2117 = vpack.c.b16 %v2073, %v2072
        %v2118 = vpack.c.b16 %v2075, %v2074
        %v2119 = vpack.c.b16 %v2077, %v2076
        %v2120 = vpack.c.b16 %v2079, %v2078
        %v2121 = vpack.c.b16 %v2081, %v2080
        %v2122 = vpack.c.b16 %v2083, %v2082
        %v2123 = vpack.c.b16 %v2085, %v2084
        %v2124 = vpack.c.b16 %v2087, %v2086
        %v2125 = vpack.c.b16 %v2089, %v2088
        %v2126 = vpack.c.b16 %v2091, %v2090
        %v2127 = vpack.c.b16 %v2093, %v2092
        %v2128 = vpack.c.b16 %v2095, %v2094
        %v2129 = vpack.c.b16 %v2097, %v2096
        %2162 = vmatpush.bf16.msra.mxu0 %v2105
        %2163 = vmatpush.bf16.msra.mxu0 %v2104
        %2164 = vmatpush.bf16.msra.mxu0 %v2103
        %2165 = vmatpush.bf16.msra.mxu0 %v2102
        %2166 = vmatpush.bf16.msra.mxu0 %v2101
        %2167 = vmatpush.bf16.msra.mxu0 %v2100
        %2168 = vmatpush.bf16.msra.mxu0 %v2099
        %2169 = vmatpush.bf16.msra.mxu0 %v2098
        %2170 = vmatmul.bf16.gmra.mxu0 %v1747
        %v2171 = vpop.f32.mrf.mxu0
        %v2172 = vadd.f32 %v1969, %v2171
        %v2173 = vpop.f32.mrf.mxu0
        %v2174 = vadd.f32 %v1969, %v2173
        %2175 = vdwg.mxu0
        %2176 = vmatpush.bf16.msra.mxu0 %v2113
        %2177 = vmatpush.bf16.msra.mxu0 %v2112
        %2178 = vmatpush.bf16.msra.mxu0 %v2111
        %2179 = vmatpush.bf16.msra.mxu0 %v2110
        %2180 = vmatpush.bf16.msra.mxu0 %v2109
        %2181 = vmatpush.bf16.msra.mxu0 %v2108
        %2182 = vmatpush.bf16.msra.mxu0 %v2107
        %2183 = vmatpush.bf16.msra.mxu0 %v2106
        %2184 = vmatmul.bf16.gmra.mxu0 %v1753
        %v2185 = vpop.f32.mrf.mxu0
        %v2186 = vadd.f32 %v2172, %v2185
        %v2187 = vpop.f32.mrf.mxu0
        %v2188 = vadd.f32 %v2174, %v2187
        %2189 = vdwg.mxu0
        %2190 = vmatpush.bf16.msra.mxu0 %v2121
        %2191 = vmatpush.bf16.msra.mxu0 %v2120
        %2192 = vmatpush.bf16.msra.mxu0 %v2119
        %2193 = vmatpush.bf16.msra.mxu0 %v2118
        %2194 = vmatpush.bf16.msra.mxu0 %v2117
        %2195 = vmatpush.bf16.msra.mxu0 %v2116
        %2196 = vmatpush.bf16.msra.mxu0 %v2115
        %2197 = vmatpush.bf16.msra.mxu0 %v2114
        %2198 = vmatmul.bf16.gmra.mxu0 %v1759
        %v2199 = vpop.f32.mrf.mxu0
        %v2200 = vadd.f32 %v2186, %v2199
        %v2201 = vpop.f32.mrf.mxu0
        %v2202 = vadd.f32 %v2188, %v2201
        %2203 = vdwg.mxu0
        %2204 = vmatpush.bf16.msra.mxu0 %v2129
        %2205 = vmatpush.bf16.msra.mxu0 %v2128
        %2206 = vmatpush.bf16.msra.mxu0 %v2127
        %2207 = vmatpush.bf16.msra.mxu0 %v2126
        %2208 = vmatpush.bf16.msra.mxu0 %v2125
        %2209 = vmatpush.bf16.msra.mxu0 %v2124
        %2210 = vmatpush.bf16.msra.mxu0 %v2123
        %2211 = vmatpush.bf16.msra.mxu0 %v2122
        %2212 = vmatmul.bf16.gmra.mxu0 %v1765
        %v2213 = vpop.f32.mrf.mxu0
        %v2214 = vadd.f32 %v2200, %v2213
        %v2215 = vpop.f32.mrf.mxu0
        %v2216 = vadd.f32 %v2202, %v2215
        %2217 = vdwg.mxu0
        %v2218 = vmax.f32 %v2214, 0.0
        %v2219 = vmax.f32 %v2216, 0.0
        %2220 = vst [vmem:[%s375] sm:$0xff] %v2218
        %2221 = vst [vmem:[%s375 + $0x8] sm:$0xff] %v2219
        %s2222 = sand.u32 %s227, 1
        %s2223 = scalar_lea.sflag [#allocation4], %s2222
        %s2224 = sand.u32 %s227, 1
        %s2225 = smul.addr %s2224, 16
        %s2226 = scalar_lea.vmem [#allocation8], %s2225
        // Predicated region
        $region69: #{tpu_custom_call.1} parent=55 // pred_check
          %p2227 = pneg %p237
        $region70: #{tpu_custom_call.1} parent=55 // pred_check_branch
          %2229 = sbr.rel (%p2227) target = $region72
        $region71: #{tpu_custom_call.1} parent=55 // pred_region
          %2231 = vsyncadd %s2223, 0
          %s2232 = smul.addr %s25, 2
          %s2233 = smul.addr %s2232, 8
          %s2234 = scalar_lea.hbm %s9, %s2233
          %s2235 = sshll.u32 %s2226, 4
          %s2236 = int_to_ptr.vmem [resolvable:$true] %s2235
          %s2237 = sshll.u32 %s2234, 4
          %s2238 = int_to_ptr.hbm [resolvable:$true] %s2237
          %2243 = dma.vmem_to_hbm [thread:$0]  %s2236, 256, %s2238, %s2223, 128, 128, 8
        $region72: #{tpu_custom_call.1} parent=55 // pred_fallthru
          _
      $region56: #{tpu_custom_call.1} parent=5 // pred_fallthru
        _
      %p2244 = scmp.le.s32.totalorder 2, %s20
      // Predicated region
      $region73: #{tpu_custom_call.1} parent=5 // pred_check
        %p2245 = pneg %p2244
      $region74: #{tpu_custom_call.1} parent=5 // pred_check_branch
        %2247 = sbr.rel (%p2245) target = $region76
      $region75: #{tpu_custom_call.1} parent=5 // pred_region
        %s2248 = ssub.s32 %s20, 2
        // Predicated region
        $region77: #{tpu_custom_call.1} parent=75 // pred_check
          %p2249 = pneg %p243
        $region78: #{tpu_custom_call.1} parent=75 // pred_check_branch
          %2251 = sbr.rel (%p2249) target = $region80
        $region79: #{tpu_custom_call.1} parent=75 // pred_region
          %s2252 = sand.u32 %s228, 1
          %s2253 = scalar_lea.sflag [#allocation4], %s2252
          %s2254 = sand.u32 %s228, 1
          %s2255 = smul.addr %s2254, 16
          %s2256 = scalar_lea.vmem [#allocation8], %s2255
          %2258 = dma.done %s2253, 256
        $region80: #{tpu_custom_call.1} parent=75 // pred_fallthru
          _
      $region76: #{tpu_custom_call.1} parent=5 // pred_fallthru
        _
    $region6: #{tpu_custom_call.1} parent=1 // loop_footer
      %s24 = sadd.s32 1, %s20
    $region7: #{tpu_custom_call.1} parent=1 // loop_footer_branch
      %19 = sbr.rel target = $region3
    $region8: #{tpu_custom_call.1} parent=1 // loop_exit
      _
    %2259 = vsyncpa [#allocation3], 1
    %s2260 = scalar_lea.sflag [#allocation3], 1
    %2261 = vsyncpa %s2260, 1
    %2262 = vsyncpa [#allocation6], 1
    %2263 = vsyncpa [#allocation4], 1
    %s2264 = scalar_lea.sflag [#allocation4], 1
    %2265 = vsyncpa %s2264, 1

</llo_original>
